<compile_context>
chip_gen: v7x
topology: tpu7x:2x2x1
jax: 0.10.0
libtpu: 0.0.40
codegen_flags: <defaults>
</compile_context>

<pallas_src>
import jax
import jax.numpy as jnp
from jax.experimental import pallas as pl
from jax.experimental.pallas import tpu as pltpu

_VMEM_LIMIT = 32 * 1024 * 1024

# Static model geometry (fc1 expects 500 inputs => 32x32 single-channel image).
_IMG = 32
_K = 5
_C1, _C2 = 10, 20
_P2 = 5                      # conv2+pool spatial size
_PHROWS = 80                 # rows of the per-sample mod-4 phase tile (64 + pad)
_NPH = 16                    # 4x4 phases of the input image
_S1_STARTS = (0, 1, 8, 9)    # conv1 slab start offsets inside the phase tile
_S2_STARTS = tuple(r * 8 + c for r in range(3) for c in range(3))  # conv2 slabs


# ---------------------------------------------------------------------------
# Fused kernel: one sample per grid step, everything stays on-chip.
# ---------------------------------------------------------------------------
def _fused_mnist_kernel(x_ref, w1_ref, b1_ref, w2_ref, b2_ref,
                        wf1_ref, bf1_ref, wf2_ref, bf2_ref, o_ref):
    """x_ref: (1, 80, 16) mod-4 polyphase image tile.
    w1_ref: (64, 160) conv1 slab-stack weights,  w2_ref: (360, 80) conv2,
    wf1_ref: (500, 50), wf2_ref: (50, 10), biases (1, C).
    o_ref: (1, 1, 10) log-probabilities."""
    xp = x_ref[0]                                               # (80, 16)

    # ---- conv1 + 2x2 max-pool + relu: polyphase slabs -> one MXU matmul ----
    slabs = [xp[s:s + 64, :] for s in _S1_STARTS]               # 4 x (64, 16)
    s1 = jnp.concatenate(slabs, axis=1)                         # (64, 64)
    y1_all = jnp.dot(s1, w1_ref[...],
                     preferred_element_type=jnp.float32)        # (64, 160)
    y1 = []                                                     # 4 phase maps
    for rs in range(4):
        acc = y1_all[:, (rs * 4) * _C1:(rs * 4) * _C1 + _C1]
        for ab in range(1, 4):
            lo = (rs * 4 + ab) * _C1
            acc = jnp.maximum(acc, y1_all[:, lo:lo + _C1])      # pool-slot max
        y1.append(jnp.maximum(acc + b1_ref[...], 0.0))          # (64, 10)

    # ---- conv2 + 2x2 max-pool + relu: polyphase slabs -> one MXU matmul ----
    pieces = []
    for ph in range(4):
        for s in _S2_STARTS:
            pieces.append(y1[ph][s:s + 40, :])                  # (40, 10)
    s2 = jnp.concatenate(pieces, axis=1)                        # (40, 360)
    y2_all = jnp.dot(s2, w2_ref[...],
                     preferred_element_type=jnp.float32)        # (40, 80)
    acc2 = y2_all[:, 0:_C2]
    for ab in range(1, 4):
        acc2 = jnp.maximum(acc2, y2_all[:, ab * _C2:(ab + 1) * _C2])
    y2 = jnp.maximum(acc2 + b2_ref[...], 0.0)                   # (40, 20)

    # ---- fc1 -> relu -> (dropout: identity, eval) -> fc2 -> log_softmax ----
    feat = jnp.concatenate(
        [y2[pi * 8 + pj:pi * 8 + pj + 1, :]
         for pi in range(_P2) for pj in range(_P2)], axis=1)    # (1, 500)
    h = jnp.dot(feat, wf1_ref[...], preferred_element_type=jnp.float32)
    h = jnp.maximum(h + bf1_ref[...], 0.0)                      # (1, 50)
    logits = jnp.dot(h, wf2_ref[...], preferred_element_type=jnp.float32)
    logits = logits + bf2_ref[...]                              # (1, 10)
    m = jnp.max(logits, axis=-1, keepdims=True)
    sh = logits - m
    lse = jnp.log(jnp.sum(jnp.exp(sh), axis=-1, keepdims=True))
    o_ref[0] = sh - lse


# ---------------------------------------------------------------------------
# Trace-time layout folding (cheap XLA ops on the tiny raw input / weights).
# ---------------------------------------------------------------------------
def _polyphase_input(x):
    """(N, 1, 32, 32) -> (N, 80, 16): x_p[n, u*8+v, mr*4+ml] = x[n,0,4u+mr,4v+ml]."""
    n = x.shape[0]
    xs = x.reshape(n, 8, 4, 8, 4)                    # [n, u, mr, v, ml]
    xs = jnp.transpose(xs, (0, 1, 3, 2, 4))          # [n, u, v, mr, ml]
    xs = xs.reshape(n, 64, 16)
    return jnp.pad(xs, ((0, 0), (0, _PHROWS - 64), (0, 0)))


def _build_w1big(w1):
    """(10, 1, 5, 5) -> (64, 160): conv1 taps scattered onto the slab stack."""
    w = w1.reshape(_C1, _K * _K).astype(jnp.float32)             # [o, tap]
    rows, combos, taps = [], [], []
    for r in range(2):
        for s in range(2):
            for a in range(2):
                for b in range(2):
                    combo = ((r * 2 + s) * 2 + a) * 2 + b
                    for kh in range(_K):
                        for kw in range(_K):
                            m = 2 * r + a + kh
                            l = 2 * s + b + kw
                            t = (m // 4) * 2 + (l // 4)
                            ph = (m % 4) * 4 + (l % 4)
                            rows.append(t * 16 + ph)
                            combos.append(combo)
                            taps.append(kh * _K + kw)
    vals = w[:, jnp.array(taps)].T                               # (400, 10)
    big = jnp.zeros((64, 16, _C1), jnp.float32)
    big = big.at[jnp.array(rows), jnp.array(combos), :].set(vals)
    return big.reshape(64, 16 * _C1)


def _build_w2big(w2):
    """(20, 10, 5, 5) -> (360, 80): conv2 taps scattered onto the slab stack."""
    wt = jnp.transpose(w2, (1, 2, 3, 0)).reshape(_C1, _K * _K, _C2)
    wt = wt.astype(jnp.float32)                                  # [c, tap, o2]
    slabs, slots, taps = [], [], []
    for a in range(2):
        for b in range(2):
            ab = a * 2 + b
            for kh in range(_K):
                for kw in range(_K):
                    m = a + kh
                    l = b + kw
                    ph = (m % 2) * 2 + (l % 2)
                    start_idx = (m // 2) * 3 + (l // 2)
                    slabs.append(ph * 9 + start_idx)
                    slots.append(ab)
                    taps.append(kh * _K + kw)
    vals = jnp.transpose(wt[:, jnp.array(taps), :], (1, 0, 2))   # (100, 10, 20)
    big = jnp.zeros((36, _C1, 4, _C2), jnp.float32)
    big = big.at[jnp.array(slabs), :, jnp.array(slots), :].set(vals)
    return big.reshape(36 * _C1, 4 * _C2)


def _build_wfc1(fc1_w):
    """(50, 500) torch (c,h,w)-flatten -> (500, 50) rows ordered (pi, pj, c)."""
    w = fc1_w.reshape(50, _C2, _P2, _P2)                         # [f, c, pi, pj]
    w = jnp.transpose(w, (2, 3, 1, 0))                           # [pi, pj, c, f]
    return w.reshape(_P2 * _P2 * _C2, 50).astype(jnp.float32)


def init_params(key):
    """Deterministic PyTorch-default-style (uniform +/- 1/sqrt(fan_in)) init."""
    ks = jax.random.split(key, 8)

    def t(k, shape, fan_in):
        bound = 1.0 / jnp.sqrt(jnp.float32(fan_in))
        return jax.random.uniform(k, shape, jnp.float32, -bound, bound)

    return dict(
        conv1_w=t(ks[0], (10, 1, 5, 5), 1 * 25),
        conv1_b=t(ks[1], (10,), 1 * 25),
        conv2_w=t(ks[2], (20, 10, 5, 5), 10 * 25),
        conv2_b=t(ks[3], (20,), 10 * 25),
        fc1_w=t(ks[4], (50, 500), 500),
        fc1_b=t(ks[5], (50,), 500),
        fc2_w=t(ks[6], (10, 50), 50),
        fc2_b=t(ks[7], (10,), 50),
    )


@jax.jit
def mnist_classifier_forward(x, params):
    """x: (N, 1, 32, 32) NCHW float32.  Returns (N, 10) log-probabilities."""
    n = x.shape[0]
    assert x.shape[1:] == (1, _IMG, _IMG)

    xp = _polyphase_input(x.astype(jnp.float32))                 # (N, 80, 16)
    w1 = _build_w1big(params["conv1_w"])
    w2 = _build_w2big(params["conv2_w"])
    wf1 = _build_wfc1(params["fc1_w"])
    wf2 = params["fc2_w"].T.astype(jnp.float32)                  # (50, 10)
    b1 = params["conv1_b"].reshape(1, _C1).astype(jnp.float32)
    b2 = params["conv2_b"].reshape(1, _C2).astype(jnp.float32)
    bf1 = params["fc1_b"].reshape(1, 50).astype(jnp.float32)
    bf2 = params["fc2_b"].reshape(1, 10).astype(jnp.float32)

    flops_per_sample = (2 * 64 * 64 * 160 + 2 * 40 * 360 * 80
                        + 2 * 500 * 50 + 2 * 50 * 10)
    weight_bytes = 4 * (64 * 160 + 360 * 80 + 500 * 50 + 50 * 10
                        + _C1 + _C2 + 50 + 10)
    cost = pl.CostEstimate(
        flops=n * flops_per_sample,
        transcendentals=n * 11,
        bytes_accessed=n * (_PHROWS * _NPH + 10) * 4 + weight_bytes,
    )

    const2 = lambda i: (0, 0)
    out = pl.pallas_call(
        _fused_mnist_kernel,
        out_shape=jax.ShapeDtypeStruct((n, 1, 10), jnp.float32),
        grid_spec=pltpu.PrefetchScalarGridSpec(
            num_scalar_prefetch=0,
            grid=(n,),
            in_specs=[
                pl.BlockSpec((1, _PHROWS, _NPH), lambda i: (i, 0, 0)),
                pl.BlockSpec((64, 160), const2),
                pl.BlockSpec((1, _C1), const2),
                pl.BlockSpec((360, 80), const2),
                pl.BlockSpec((1, _C2), const2),
                pl.BlockSpec((500, 50), const2),
                pl.BlockSpec((1, 50), const2),
                pl.BlockSpec((50, 10), const2),
                pl.BlockSpec((1, 10), const2),
            ],
            out_specs=pl.BlockSpec((1, 1, 10), lambda i: (i, 0, 0)),
        ),
        compiler_params=pltpu.CompilerParams(
            dimension_semantics=("parallel",),
            vmem_limit_bytes=_VMEM_LIMIT,
        ),
        cost_estimate=cost,
    )(xp, w1, b1, w2, b2, wf1, bf1, wf2, bf2)
    return out.reshape(n, 10)


# ---------------------------------------------------------------------------
# Pure-JAX (XLA) reference for a correctness sanity check.
# ---------------------------------------------------------------------------
def _reference_forward(x, params):
    n = x.shape[0]
    xs = x[:, 0].astype(jnp.float32)                             # (N, 32, 32)
    c1 = jnp.zeros((n, _C1, 28, 28), jnp.float32)
    for kh in range(_K):
        for kw in range(_K):
            c1 = c1 + (params["conv1_w"][None, :, 0, kh, kw, None, None]
                       * xs[:, None, kh:kh + 28, kw:kw + 28])
    c1 = c1 + params["conv1_b"][None, :, None, None]
    y1 = jnp.maximum(jnp.max(c1.reshape(n, _C1, 14, 2, 14, 2), axis=(3, 5)), 0.0)
    c2 = jnp.zeros((n, _C2, 10, 10), jnp.float32)
    for kh in range(_K):
        for kw in range(_K):
            c2 = c2 + jnp.einsum('nchw,oc->nohw',
                                 y1[:, :, kh:kh + 10, kw:kw + 10],
                                 params["conv2_w"][:, :, kh, kw])
    c2 = c2 + params["conv2_b"][None, :, None, None]
    y2 = jnp.maximum(jnp.max(c2.reshape(n, _C2, 5, 2, 5, 2), axis=(3, 5)), 0.0)
    feat = y2.reshape(n, 500)
    h = jnp.maximum(feat @ params["fc1_w"].T + params["fc1_b"], 0.0)
    logits = h @ params["fc2_w"].T + params["fc2_b"]
    return jax.nn.log_softmax(logits, axis=-1)


if __name__ == "__main__":
    key = jax.random.PRNGKey(0)
    k_params, k_x = jax.random.split(key)
    params = init_params(k_params)
    x = jax.random.normal(k_x, (2, 1, _IMG, _IMG), jnp.float32)  # NCHW like PyTorch

    out = mnist_classifier_forward(x, params)
    out = jax.block_until_ready(out)

    assert out.shape == (2, 10) and out.dtype == jnp.float32
    assert bool(jnp.all(jnp.isfinite(out)))
    row_sums = jnp.sum(jnp.exp(out), axis=1)          # log_softmax rows sum to 1
    assert bool(jnp.all(jnp.abs(row_sums - 1.0) < 1e-4))

    ref = _reference_forward(x, params)
    max_err = float(jnp.max(jnp.abs(out - ref)))
    assert max_err < 1e-1, f"mismatch vs reference: {max_err}"
    print("KERNEL_OK")
</pallas_src>

<mosaic_0001>
module attributes {stable_mosaic.version = 11 : i64} {
  func.func @_fused_mnist_kernel(%arg0: i32, %arg1: memref<1x80x16xf32, #tpu.memory_space<vmem>>, %arg2: memref<64x160xf32, #tpu.memory_space<vmem>>, %arg3: memref<1x10xf32, #tpu.memory_space<vmem>>, %arg4: memref<360x80xf32, #tpu.memory_space<vmem>>, %arg5: memref<1x20xf32, #tpu.memory_space<vmem>>, %arg6: memref<500x50xf32, #tpu.memory_space<vmem>>, %arg7: memref<1x50xf32, #tpu.memory_space<vmem>>, %arg8: memref<50x10xf32, #tpu.memory_space<vmem>>, %arg9: memref<1x10xf32, #tpu.memory_space<vmem>>, %arg10: memref<1x1x10xf32, #tpu.memory_space<vmem>>) attributes {dimension_semantics = [#tpu.dimension_semantics<parallel>], iteration_bounds = array<i64: 2>, scalar_prefetch = 0 : i64, scratch_operands = 0 : i64, tpu.core_type = #tpu.core_type<tc>, window_params = [{transform_indices = @transform_0, window_bounds = array<i64: 1, 80, 16>}, {pipeline_mode = #tpu.pipeline_mode<synchronous>, transform_indices = @transform_1, window_bounds = array<i64: 64, 160>}, {pipeline_mode = #tpu.pipeline_mode<synchronous>, transform_indices = @transform_2, window_bounds = array<i64: 1, 10>}, {pipeline_mode = #tpu.pipeline_mode<synchronous>, transform_indices = @transform_3, window_bounds = array<i64: 360, 80>}, {pipeline_mode = #tpu.pipeline_mode<synchronous>, transform_indices = @transform_4, window_bounds = array<i64: 1, 20>}, {pipeline_mode = #tpu.pipeline_mode<synchronous>, transform_indices = @transform_5, window_bounds = array<i64: 500, 50>}, {pipeline_mode = #tpu.pipeline_mode<synchronous>, transform_indices = @transform_6, window_bounds = array<i64: 1, 50>}, {pipeline_mode = #tpu.pipeline_mode<synchronous>, transform_indices = @transform_7, window_bounds = array<i64: 50, 10>}, {pipeline_mode = #tpu.pipeline_mode<synchronous>, transform_indices = @transform_8, window_bounds = array<i64: 1, 10>}, {transform_indices = @transform_9, window_bounds = array<i64: 1, 1, 10>}]} {
    %c0 = arith.constant 0 : index
    %c0_0 = arith.constant 0 : index
    %c0_1 = arith.constant 0 : index
    %0 = vector.load %arg1[%c0, %c0_0, %c0_1] : memref<1x80x16xf32, #tpu.memory_space<vmem>>, vector<1x80x16xf32>
    %1 = vector.shape_cast %0 : vector<1x80x16xf32> to vector<80x16xf32>
    %2 = vector.extract_strided_slice %1 {offsets = [0, 0], sizes = [64, 16], strides = [1, 1]} : vector<80x16xf32> to vector<64x16xf32>
    %3 = vector.extract_strided_slice %1 {offsets = [1, 0], sizes = [64, 16], strides = [1, 1]} : vector<80x16xf32> to vector<64x16xf32>
    %4 = vector.extract_strided_slice %1 {offsets = [8, 0], sizes = [64, 16], strides = [1, 1]} : vector<80x16xf32> to vector<64x16xf32>
    %5 = vector.extract_strided_slice %1 {offsets = [9, 0], sizes = [64, 16], strides = [1, 1]} : vector<80x16xf32> to vector<64x16xf32>
    %6 = tpu.concatenate %2, %3, %4, %5 in 1 : vector<64x16xf32>, vector<64x16xf32>, vector<64x16xf32>, vector<64x16xf32> -> vector<64x64xf32>
    %c0_2 = arith.constant 0 : index
    %c0_3 = arith.constant 0 : index
    %7 = vector.load %arg2[%c0_2, %c0_3] : memref<64x160xf32, #tpu.memory_space<vmem>>, vector<64x160xf32>
    %cst = arith.constant dense<0.000000e+00> : vector<64x160xf32>
    %8 = tpu.matmul %6, %7, %cst {dimension_numbers = #tpu.dot_dimension_numbers<[1], [0], [0], [1], [0, 0, 1, 1], [], []>} : vector<64x64xf32>, vector<64x160xf32>, vector<64x160xf32> -> vector<64x160xf32>
    %9 = vector.extract_strided_slice %8 {offsets = [0, 0], sizes = [64, 10], strides = [1, 1]} : vector<64x160xf32> to vector<64x10xf32>
    %10 = vector.extract_strided_slice %8 {offsets = [0, 10], sizes = [64, 10], strides = [1, 1]} : vector<64x160xf32> to vector<64x10xf32>
    %11 = arith.maximumf %9, %10 : vector<64x10xf32>
    %12 = vector.extract_strided_slice %8 {offsets = [0, 20], sizes = [64, 10], strides = [1, 1]} : vector<64x160xf32> to vector<64x10xf32>
    %13 = arith.maximumf %11, %12 : vector<64x10xf32>
    %14 = vector.extract_strided_slice %8 {offsets = [0, 30], sizes = [64, 10], strides = [1, 1]} : vector<64x160xf32> to vector<64x10xf32>
    %15 = arith.maximumf %13, %14 : vector<64x10xf32>
    %c0_4 = arith.constant 0 : index
    %c0_5 = arith.constant 0 : index
    %16 = vector.load %arg3[%c0_4, %c0_5] : memref<1x10xf32, #tpu.memory_space<vmem>>, vector<1x10xf32>
    %17 = vector.broadcast %16 : vector<1x10xf32> to vector<64x10xf32>
    %18 = arith.addf %15, %17 : vector<64x10xf32>
    %cst_6 = arith.constant 0.000000e+00 : f32
    %19 = vector.broadcast %cst_6 : f32 to vector<64x10xf32>
    %20 = arith.maximumf %18, %19 : vector<64x10xf32>
    %21 = vector.extract_strided_slice %8 {offsets = [0, 40], sizes = [64, 10], strides = [1, 1]} : vector<64x160xf32> to vector<64x10xf32>
    %22 = vector.extract_strided_slice %8 {offsets = [0, 50], sizes = [64, 10], strides = [1, 1]} : vector<64x160xf32> to vector<64x10xf32>
    %23 = arith.maximumf %21, %22 : vector<64x10xf32>
    %24 = vector.extract_strided_slice %8 {offsets = [0, 60], sizes = [64, 10], strides = [1, 1]} : vector<64x160xf32> to vector<64x10xf32>
    %25 = arith.maximumf %23, %24 : vector<64x10xf32>
    %26 = vector.extract_strided_slice %8 {offsets = [0, 70], sizes = [64, 10], strides = [1, 1]} : vector<64x160xf32> to vector<64x10xf32>
    %27 = arith.maximumf %25, %26 : vector<64x10xf32>
    %c0_7 = arith.constant 0 : index
    %c0_8 = arith.constant 0 : index
    %28 = vector.load %arg3[%c0_7, %c0_8] : memref<1x10xf32, #tpu.memory_space<vmem>>, vector<1x10xf32>
    %29 = vector.broadcast %28 : vector<1x10xf32> to vector<64x10xf32>
    %30 = arith.addf %27, %29 : vector<64x10xf32>
    %cst_9 = arith.constant 0.000000e+00 : f32
    %31 = vector.broadcast %cst_9 : f32 to vector<64x10xf32>
    %32 = arith.maximumf %30, %31 : vector<64x10xf32>
    %33 = vector.extract_strided_slice %8 {offsets = [0, 80], sizes = [64, 10], strides = [1, 1]} : vector<64x160xf32> to vector<64x10xf32>
    %34 = vector.extract_strided_slice %8 {offsets = [0, 90], sizes = [64, 10], strides = [1, 1]} : vector<64x160xf32> to vector<64x10xf32>
    %35 = arith.maximumf %33, %34 : vector<64x10xf32>
    %36 = vector.extract_strided_slice %8 {offsets = [0, 100], sizes = [64, 10], strides = [1, 1]} : vector<64x160xf32> to vector<64x10xf32>
    %37 = arith.maximumf %35, %36 : vector<64x10xf32>
    %38 = vector.extract_strided_slice %8 {offsets = [0, 110], sizes = [64, 10], strides = [1, 1]} : vector<64x160xf32> to vector<64x10xf32>
    %39 = arith.maximumf %37, %38 : vector<64x10xf32>
    %c0_10 = arith.constant 0 : index
    %c0_11 = arith.constant 0 : index
    %40 = vector.load %arg3[%c0_10, %c0_11] : memref<1x10xf32, #tpu.memory_space<vmem>>, vector<1x10xf32>
    %41 = vector.broadcast %40 : vector<1x10xf32> to vector<64x10xf32>
    %42 = arith.addf %39, %41 : vector<64x10xf32>
    %cst_12 = arith.constant 0.000000e+00 : f32
    %43 = vector.broadcast %cst_12 : f32 to vector<64x10xf32>
    %44 = arith.maximumf %42, %43 : vector<64x10xf32>
    %45 = vector.extract_strided_slice %8 {offsets = [0, 120], sizes = [64, 10], strides = [1, 1]} : vector<64x160xf32> to vector<64x10xf32>
    %46 = vector.extract_strided_slice %8 {offsets = [0, 130], sizes = [64, 10], strides = [1, 1]} : vector<64x160xf32> to vector<64x10xf32>
    %47 = arith.maximumf %45, %46 : vector<64x10xf32>
    %48 = vector.extract_strided_slice %8 {offsets = [0, 140], sizes = [64, 10], strides = [1, 1]} : vector<64x160xf32> to vector<64x10xf32>
    %49 = arith.maximumf %47, %48 : vector<64x10xf32>
    %50 = vector.extract_strided_slice %8 {offsets = [0, 150], sizes = [64, 10], strides = [1, 1]} : vector<64x160xf32> to vector<64x10xf32>
    %51 = arith.maximumf %49, %50 : vector<64x10xf32>
    %c0_13 = arith.constant 0 : index
    %c0_14 = arith.constant 0 : index
    %52 = vector.load %arg3[%c0_13, %c0_14] : memref<1x10xf32, #tpu.memory_space<vmem>>, vector<1x10xf32>
    %53 = vector.broadcast %52 : vector<1x10xf32> to vector<64x10xf32>
    %54 = arith.addf %51, %53 : vector<64x10xf32>
    %cst_15 = arith.constant 0.000000e+00 : f32
    %55 = vector.broadcast %cst_15 : f32 to vector<64x10xf32>
    %56 = arith.maximumf %54, %55 : vector<64x10xf32>
    %57 = vector.extract_strided_slice %20 {offsets = [0, 0], sizes = [40, 10], strides = [1, 1]} : vector<64x10xf32> to vector<40x10xf32>
    %58 = vector.extract_strided_slice %20 {offsets = [1, 0], sizes = [40, 10], strides = [1, 1]} : vector<64x10xf32> to vector<40x10xf32>
    %59 = vector.extract_strided_slice %20 {offsets = [2, 0], sizes = [40, 10], strides = [1, 1]} : vector<64x10xf32> to vector<40x10xf32>
    %60 = vector.extract_strided_slice %20 {offsets = [8, 0], sizes = [40, 10], strides = [1, 1]} : vector<64x10xf32> to vector<40x10xf32>
    %61 = vector.extract_strided_slice %20 {offsets = [9, 0], sizes = [40, 10], strides = [1, 1]} : vector<64x10xf32> to vector<40x10xf32>
    %62 = vector.extract_strided_slice %20 {offsets = [10, 0], sizes = [40, 10], strides = [1, 1]} : vector<64x10xf32> to vector<40x10xf32>
    %63 = vector.extract_strided_slice %20 {offsets = [16, 0], sizes = [40, 10], strides = [1, 1]} : vector<64x10xf32> to vector<40x10xf32>
    %64 = vector.extract_strided_slice %20 {offsets = [17, 0], sizes = [40, 10], strides = [1, 1]} : vector<64x10xf32> to vector<40x10xf32>
    %65 = vector.extract_strided_slice %20 {offsets = [18, 0], sizes = [40, 10], strides = [1, 1]} : vector<64x10xf32> to vector<40x10xf32>
    %66 = vector.extract_strided_slice %32 {offsets = [0, 0], sizes = [40, 10], strides = [1, 1]} : vector<64x10xf32> to vector<40x10xf32>
    %67 = vector.extract_strided_slice %32 {offsets = [1, 0], sizes = [40, 10], strides = [1, 1]} : vector<64x10xf32> to vector<40x10xf32>
    %68 = vector.extract_strided_slice %32 {offsets = [2, 0], sizes = [40, 10], strides = [1, 1]} : vector<64x10xf32> to vector<40x10xf32>
    %69 = vector.extract_strided_slice %32 {offsets = [8, 0], sizes = [40, 10], strides = [1, 1]} : vector<64x10xf32> to vector<40x10xf32>
    %70 = vector.extract_strided_slice %32 {offsets = [9, 0], sizes = [40, 10], strides = [1, 1]} : vector<64x10xf32> to vector<40x10xf32>
    %71 = vector.extract_strided_slice %32 {offsets = [10, 0], sizes = [40, 10], strides = [1, 1]} : vector<64x10xf32> to vector<40x10xf32>
    %72 = vector.extract_strided_slice %32 {offsets = [16, 0], sizes = [40, 10], strides = [1, 1]} : vector<64x10xf32> to vector<40x10xf32>
    %73 = vector.extract_strided_slice %32 {offsets = [17, 0], sizes = [40, 10], strides = [1, 1]} : vector<64x10xf32> to vector<40x10xf32>
    %74 = vector.extract_strided_slice %32 {offsets = [18, 0], sizes = [40, 10], strides = [1, 1]} : vector<64x10xf32> to vector<40x10xf32>
    %75 = vector.extract_strided_slice %44 {offsets = [0, 0], sizes = [40, 10], strides = [1, 1]} : vector<64x10xf32> to vector<40x10xf32>
    %76 = vector.extract_strided_slice %44 {offsets = [1, 0], sizes = [40, 10], strides = [1, 1]} : vector<64x10xf32> to vector<40x10xf32>
    %77 = vector.extract_strided_slice %44 {offsets = [2, 0], sizes = [40, 10], strides = [1, 1]} : vector<64x10xf32> to vector<40x10xf32>
    %78 = vector.extract_strided_slice %44 {offsets = [8, 0], sizes = [40, 10], strides = [1, 1]} : vector<64x10xf32> to vector<40x10xf32>
    %79 = vector.extract_strided_slice %44 {offsets = [9, 0], sizes = [40, 10], strides = [1, 1]} : vector<64x10xf32> to vector<40x10xf32>
    %80 = vector.extract_strided_slice %44 {offsets = [10, 0], sizes = [40, 10], strides = [1, 1]} : vector<64x10xf32> to vector<40x10xf32>
    %81 = vector.extract_strided_slice %44 {offsets = [16, 0], sizes = [40, 10], strides = [1, 1]} : vector<64x10xf32> to vector<40x10xf32>
    %82 = vector.extract_strided_slice %44 {offsets = [17, 0], sizes = [40, 10], strides = [1, 1]} : vector<64x10xf32> to vector<40x10xf32>
    %83 = vector.extract_strided_slice %44 {offsets = [18, 0], sizes = [40, 10], strides = [1, 1]} : vector<64x10xf32> to vector<40x10xf32>
    %84 = vector.extract_strided_slice %56 {offsets = [0, 0], sizes = [40, 10], strides = [1, 1]} : vector<64x10xf32> to vector<40x10xf32>
    %85 = vector.extract_strided_slice %56 {offsets = [1, 0], sizes = [40, 10], strides = [1, 1]} : vector<64x10xf32> to vector<40x10xf32>
    %86 = vector.extract_strided_slice %56 {offsets = [2, 0], sizes = [40, 10], strides = [1, 1]} : vector<64x10xf32> to vector<40x10xf32>
    %87 = vector.extract_strided_slice %56 {offsets = [8, 0], sizes = [40, 10], strides = [1, 1]} : vector<64x10xf32> to vector<40x10xf32>
    %88 = vector.extract_strided_slice %56 {offsets = [9, 0], sizes = [40, 10], strides = [1, 1]} : vector<64x10xf32> to vector<40x10xf32>
    %89 = vector.extract_strided_slice %56 {offsets = [10, 0], sizes = [40, 10], strides = [1, 1]} : vector<64x10xf32> to vector<40x10xf32>
    %90 = vector.extract_strided_slice %56 {offsets = [16, 0], sizes = [40, 10], strides = [1, 1]} : vector<64x10xf32> to vector<40x10xf32>
    %91 = vector.extract_strided_slice %56 {offsets = [17, 0], sizes = [40, 10], strides = [1, 1]} : vector<64x10xf32> to vector<40x10xf32>
    %92 = vector.extract_strided_slice %56 {offsets = [18, 0], sizes = [40, 10], strides = [1, 1]} : vector<64x10xf32> to vector<40x10xf32>
    %93 = tpu.concatenate %57, %58, %59, %60, %61, %62, %63, %64, %65, %66, %67, %68, %69, %70, %71, %72 in 1 : vector<40x10xf32>, vector<40x10xf32>, vector<40x10xf32>, vector<40x10xf32>, vector<40x10xf32>, vector<40x10xf32>, vector<40x10xf32>, vector<40x10xf32>, vector<40x10xf32>, vector<40x10xf32>, vector<40x10xf32>, vector<40x10xf32>, vector<40x10xf32>, vector<40x10xf32>, vector<40x10xf32>, vector<40x10xf32> -> vector<40x160xf32>
    %94 = tpu.concatenate %73, %74, %75, %76, %77, %78, %79, %80, %81, %82, %83, %84, %85, %86, %87, %88 in 1 : vector<40x10xf32>, vector<40x10xf32>, vector<40x10xf32>, vector<40x10xf32>, vector<40x10xf32>, vector<40x10xf32>, vector<40x10xf32>, vector<40x10xf32>, vector<40x10xf32>, vector<40x10xf32>, vector<40x10xf32>, vector<40x10xf32>, vector<40x10xf32>, vector<40x10xf32>, vector<40x10xf32>, vector<40x10xf32> -> vector<40x160xf32>
    %95 = tpu.concatenate %89, %90, %91, %92 in 1 : vector<40x10xf32>, vector<40x10xf32>, vector<40x10xf32>, vector<40x10xf32> -> vector<40x40xf32>
    %96 = tpu.concatenate %93, %94, %95 in 1 : vector<40x160xf32>, vector<40x160xf32>, vector<40x40xf32> -> vector<40x360xf32>
    %c0_16 = arith.constant 0 : index
    %c0_17 = arith.constant 0 : index
    %97 = vector.load %arg4[%c0_16, %c0_17] : memref<360x80xf32, #tpu.memory_space<vmem>>, vector<360x80xf32>
    %cst_18 = arith.constant dense<0.000000e+00> : vector<40x80xf32>
    %98 = tpu.matmul %96, %97, %cst_18 {dimension_numbers = #tpu.dot_dimension_numbers<[1], [0], [0], [1], [0, 0, 1, 1], [], []>} : vector<40x360xf32>, vector<360x80xf32>, vector<40x80xf32> -> vector<40x80xf32>
    %99 = vector.extract_strided_slice %98 {offsets = [0, 0], sizes = [40, 20], strides = [1, 1]} : vector<40x80xf32> to vector<40x20xf32>
    %100 = vector.extract_strided_slice %98 {offsets = [0, 20], sizes = [40, 20], strides = [1, 1]} : vector<40x80xf32> to vector<40x20xf32>
    %101 = arith.maximumf %99, %100 : vector<40x20xf32>
    %102 = vector.extract_strided_slice %98 {offsets = [0, 40], sizes = [40, 20], strides = [1, 1]} : vector<40x80xf32> to vector<40x20xf32>
    %103 = arith.maximumf %101, %102 : vector<40x20xf32>
    %104 = vector.extract_strided_slice %98 {offsets = [0, 60], sizes = [40, 20], strides = [1, 1]} : vector<40x80xf32> to vector<40x20xf32>
    %105 = arith.maximumf %103, %104 : vector<40x20xf32>
    %c0_19 = arith.constant 0 : index
    %c0_20 = arith.constant 0 : index
    %106 = vector.load %arg5[%c0_19, %c0_20] : memref<1x20xf32, #tpu.memory_space<vmem>>, vector<1x20xf32>
    %107 = vector.broadcast %106 : vector<1x20xf32> to vector<40x20xf32>
    %108 = arith.addf %105, %107 : vector<40x20xf32>
    %cst_21 = arith.constant 0.000000e+00 : f32
    %109 = vector.broadcast %cst_21 : f32 to vector<40x20xf32>
    %110 = arith.maximumf %108, %109 : vector<40x20xf32>
    %111 = vector.extract_strided_slice %110 {offsets = [0, 0], sizes = [1, 20], strides = [1, 1]} : vector<40x20xf32> to vector<1x20xf32>
    %112 = vector.extract_strided_slice %110 {offsets = [1, 0], sizes = [1, 20], strides = [1, 1]} : vector<40x20xf32> to vector<1x20xf32>
    %113 = vector.extract_strided_slice %110 {offsets = [2, 0], sizes = [1, 20], strides = [1, 1]} : vector<40x20xf32> to vector<1x20xf32>
    %114 = vector.extract_strided_slice %110 {offsets = [3, 0], sizes = [1, 20], strides = [1, 1]} : vector<40x20xf32> to vector<1x20xf32>
    %115 = vector.extract_strided_slice %110 {offsets = [4, 0], sizes = [1, 20], strides = [1, 1]} : vector<40x20xf32> to vector<1x20xf32>
    %116 = vector.extract_strided_slice %110 {offsets = [8, 0], sizes = [1, 20], strides = [1, 1]} : vector<40x20xf32> to vector<1x20xf32>
    %117 = vector.extract_strided_slice %110 {offsets = [9, 0], sizes = [1, 20], strides = [1, 1]} : vector<40x20xf32> to vector<1x20xf32>
    %118 = vector.extract_strided_slice %110 {offsets = [10, 0], sizes = [1, 20], strides = [1, 1]} : vector<40x20xf32> to vector<1x20xf32>
    %119 = vector.extract_strided_slice %110 {offsets = [11, 0], sizes = [1, 20], strides = [1, 1]} : vector<40x20xf32> to vector<1x20xf32>
    %120 = vector.extract_strided_slice %110 {offsets = [12, 0], sizes = [1, 20], strides = [1, 1]} : vector<40x20xf32> to vector<1x20xf32>
    %121 = vector.extract_strided_slice %110 {offsets = [16, 0], sizes = [1, 20], strides = [1, 1]} : vector<40x20xf32> to vector<1x20xf32>
    %122 = vector.extract_strided_slice %110 {offsets = [17, 0], sizes = [1, 20], strides = [1, 1]} : vector<40x20xf32> to vector<1x20xf32>
    %123 = vector.extract_strided_slice %110 {offsets = [18, 0], sizes = [1, 20], strides = [1, 1]} : vector<40x20xf32> to vector<1x20xf32>
    %124 = vector.extract_strided_slice %110 {offsets = [19, 0], sizes = [1, 20], strides = [1, 1]} : vector<40x20xf32> to vector<1x20xf32>
    %125 = vector.extract_strided_slice %110 {offsets = [20, 0], sizes = [1, 20], strides = [1, 1]} : vector<40x20xf32> to vector<1x20xf32>
    %126 = vector.extract_strided_slice %110 {offsets = [24, 0], sizes = [1, 20], strides = [1, 1]} : vector<40x20xf32> to vector<1x20xf32>
    %127 = vector.extract_strided_slice %110 {offsets = [25, 0], sizes = [1, 20], strides = [1, 1]} : vector<40x20xf32> to vector<1x20xf32>
    %128 = vector.extract_strided_slice %110 {offsets = [26, 0], sizes = [1, 20], strides = [1, 1]} : vector<40x20xf32> to vector<1x20xf32>
    %129 = vector.extract_strided_slice %110 {offsets = [27, 0], sizes = [1, 20], strides = [1, 1]} : vector<40x20xf32> to vector<1x20xf32>
    %130 = vector.extract_strided_slice %110 {offsets = [28, 0], sizes = [1, 20], strides = [1, 1]} : vector<40x20xf32> to vector<1x20xf32>
    %131 = vector.extract_strided_slice %110 {offsets = [32, 0], sizes = [1, 20], strides = [1, 1]} : vector<40x20xf32> to vector<1x20xf32>
    %132 = vector.extract_strided_slice %110 {offsets = [33, 0], sizes = [1, 20], strides = [1, 1]} : vector<40x20xf32> to vector<1x20xf32>
    %133 = vector.extract_strided_slice %110 {offsets = [34, 0], sizes = [1, 20], strides = [1, 1]} : vector<40x20xf32> to vector<1x20xf32>
    %134 = vector.extract_strided_slice %110 {offsets = [35, 0], sizes = [1, 20], strides = [1, 1]} : vector<40x20xf32> to vector<1x20xf32>
    %135 = vector.extract_strided_slice %110 {offsets = [36, 0], sizes = [1, 20], strides = [1, 1]} : vector<40x20xf32> to vector<1x20xf32>
    %136 = tpu.concatenate %111, %112, %113, %114, %115, %116, %117, %118, %119, %120, %121, %122, %123, %124, %125, %126 in 1 : vector<1x20xf32>, vector<1x20xf32>, vector<1x20xf32>, vector<1x20xf32>, vector<1x20xf32>, vector<1x20xf32>, vector<1x20xf32>, vector<1x20xf32>, vector<1x20xf32>, vector<1x20xf32>, vector<1x20xf32>, vector<1x20xf32>, vector<1x20xf32>, vector<1x20xf32>, vector<1x20xf32>, vector<1x20xf32> -> vector<1x320xf32>
    %137 = tpu.concatenate %127, %128, %129, %130, %131, %132, %133, %134, %135 in 1 : vector<1x20xf32>, vector<1x20xf32>, vector<1x20xf32>, vector<1x20xf32>, vector<1x20xf32>, vector<1x20xf32>, vector<1x20xf32>, vector<1x20xf32>, vector<1x20xf32> -> vector<1x180xf32>
    %138 = tpu.concatenate %136, %137 in 1 : vector<1x320xf32>, vector<1x180xf32> -> vector<1x500xf32>
    %c0_22 = arith.constant 0 : index
    %c0_23 = arith.constant 0 : index
    %139 = vector.load %arg6[%c0_22, %c0_23] : memref<500x50xf32, #tpu.memory_space<vmem>>, vector<500x50xf32>
    %cst_24 = arith.constant dense<0.000000e+00> : vector<1x50xf32>
    %140 = tpu.matmul %138, %139, %cst_24 {dimension_numbers = #tpu.dot_dimension_numbers<[1], [0], [0], [1], [0, 0, 1, 1], [], []>} : vector<1x500xf32>, vector<500x50xf32>, vector<1x50xf32> -> vector<1x50xf32>
    %c0_25 = arith.constant 0 : index
    %c0_26 = arith.constant 0 : index
    %141 = vector.load %arg7[%c0_25, %c0_26] : memref<1x50xf32, #tpu.memory_space<vmem>>, vector<1x50xf32>
    %142 = arith.addf %140, %141 : vector<1x50xf32>
    %cst_27 = arith.constant 0.000000e+00 : f32
    %143 = vector.broadcast %cst_27 : f32 to vector<1x50xf32>
    %144 = arith.maximumf %142, %143 : vector<1x50xf32>
    %c0_28 = arith.constant 0 : index
    %c0_29 = arith.constant 0 : index
    %145 = vector.load %arg8[%c0_28, %c0_29] : memref<50x10xf32, #tpu.memory_space<vmem>>, vector<50x10xf32>
    %cst_30 = arith.constant dense<0.000000e+00> : vector<1x10xf32>
    %146 = tpu.matmul %144, %145, %cst_30 {dimension_numbers = #tpu.dot_dimension_numbers<[1], [0], [0], [1], [0, 0, 1, 1], [], []>} : vector<1x50xf32>, vector<50x10xf32>, vector<1x10xf32> -> vector<1x10xf32>
    %c0_31 = arith.constant 0 : index
    %c0_32 = arith.constant 0 : index
    %147 = vector.load %arg9[%c0_31, %c0_32] : memref<1x10xf32, #tpu.memory_space<vmem>>, vector<1x10xf32>
    %148 = arith.addf %146, %147 : vector<1x10xf32>
    %cst_33 = arith.constant dense<0xFF800000> : vector<1xf32>
    %149 = vector.multi_reduction <maximumf>, %148, %cst_33 [1] : vector<1x10xf32> to vector<1xf32>
    %150 = vector.shape_cast %149 : vector<1xf32> to vector<1x1xf32>
    %151 = vector.broadcast %150 : vector<1x1xf32> to vector<1x10xf32>
    %152 = arith.subf %148, %151 : vector<1x10xf32>
    %153 = math.exp %152 : vector<1x10xf32>
    %cst_34 = arith.constant dense<0.000000e+00> : vector<1xf32>
    %154 = vector.multi_reduction <add>, %153, %cst_34 [1] : vector<1x10xf32> to vector<1xf32>
    %155 = vector.shape_cast %154 : vector<1xf32> to vector<1x1xf32>
    %156 = math.log %155 : vector<1x1xf32>
    %157 = vector.broadcast %156 : vector<1x1xf32> to vector<1x10xf32>
    %158 = arith.subf %152, %157 : vector<1x10xf32>
    %c0_35 = arith.constant 0 : index
    %c0_36 = arith.constant 0 : index
    %c0_37 = arith.constant 0 : index
    %159 = vector.load %arg10[%c0_35, %c0_36, %c0_37] : memref<1x1x10xf32, #tpu.memory_space<vmem>>, vector<1x1x10xf32>
    %160 = vector.shape_cast %159 : vector<1x1x10xf32> to vector<1x10xf32>
    %161 = vector.shape_cast %158 : vector<1x10xf32> to vector<1x1x10xf32>
    tpu.vector_store %arg10[%c0_35, %c0_36, %c0_37], %161 {strides = array<i32>} : memref<1x1x10xf32, #tpu.memory_space<vmem>>, vector<1x1x10xf32>,
    return
  }
  func.func @transform_0(%arg0: i32) -> (i32, i32, i32) {
    %c0_i32 = arith.constant 0 : i32
    %c0_i32_0 = arith.constant 0 : i32
    %c0_i32_1 = arith.constant 0 : i32
    return %arg0, %c0_i32, %c0_i32_0 : i32, i32, i32
  }
  func.func @transform_1(%arg0: i32) -> (i32, i32) {
    %c0_i32 = arith.constant 0 : i32
    %c0_i32_0 = arith.constant 0 : i32
    %c0_i32_1 = arith.constant 0 : i32
    return %c0_i32, %c0_i32_0 : i32, i32
  }
  func.func @transform_2(%arg0: i32) -> (i32, i32) {
    %c0_i32 = arith.constant 0 : i32
    %c0_i32_0 = arith.constant 0 : i32
    %c0_i32_1 = arith.constant 0 : i32
    return %c0_i32, %c0_i32_0 : i32, i32
  }
  func.func @transform_3(%arg0: i32) -> (i32, i32) {
    %c0_i32 = arith.constant 0 : i32
    %c0_i32_0 = arith.constant 0 : i32
    %c0_i32_1 = arith.constant 0 : i32
    return %c0_i32, %c0_i32_0 : i32, i32
  }
  func.func @transform_4(%arg0: i32) -> (i32, i32) {
    %c0_i32 = arith.constant 0 : i32
    %c0_i32_0 = arith.constant 0 : i32
    %c0_i32_1 = arith.constant 0 : i32
    return %c0_i32, %c0_i32_0 : i32, i32
  }
  func.func @transform_5(%arg0: i32) -> (i32, i32) {
    %c0_i32 = arith.constant 0 : i32
    %c0_i32_0 = arith.constant 0 : i32
    %c0_i32_1 = arith.constant 0 : i32
    return %c0_i32, %c0_i32_0 : i32, i32
  }
  func.func @transform_6(%arg0: i32) -> (i32, i32) {
    %c0_i32 = arith.constant 0 : i32
    %c0_i32_0 = arith.constant 0 : i32
    %c0_i32_1 = arith.constant 0 : i32
    return %c0_i32, %c0_i32_0 : i32, i32
  }
  func.func @transform_7(%arg0: i32) -> (i32, i32) {
    %c0_i32 = arith.constant 0 : i32
    %c0_i32_0 = arith.constant 0 : i32
    %c0_i32_1 = arith.constant 0 : i32
    return %c0_i32, %c0_i32_0 : i32, i32
  }
  func.func @transform_8(%arg0: i32) -> (i32, i32) {
    %c0_i32 = arith.constant 0 : i32
    %c0_i32_0 = arith.constant 0 : i32
    %c0_i32_1 = arith.constant 0 : i32
    return %c0_i32, %c0_i32_0 : i32, i32
  }
  func.func @transform_9(%arg0: i32) -> (i32, i32, i32) {
    %c0_i32 = arith.constant 0 : i32
    %c0_i32_0 = arith.constant 0 : i32
    %c0_i32_1 = arith.constant 0 : i32
    return %arg0, %c0_i32, %c0_i32_0 : i32, i32, i32
  }
}

</mosaic_0001>

<llo_original>
// kernel: mnist_classifier_forward.1
$region0: #{mnist_classifier_forward.1}
  #allocation0 [shape = 'u32[]', space=smem, size = 0x4, offset = 0x4, fixed_abs, tag = 'smem constant byte address 0x4 - core index']
  #allocation1 [shape = 'u32[144,128]{1,0:T(1,128)}', space=vmem, size = 0x12000, scoped, tag = 'internal scratch']
  %s0 = inlined_call_operand.vmem [shape: f32[2,80,16], index: 0, kind: input, shape index: {}]
  %s1 = inlined_call_operand.vmem [shape: f32[64,160], index: 1, kind: input, shape index: {}]
  %s2 = inlined_call_operand.vmem [shape: f32[1,10], index: 2, kind: input, shape index: {}]
  %s3 = inlined_call_operand.vmem [shape: f32[360,80], index: 3, kind: input, shape index: {}]
  %s4 = inlined_call_operand.vmem [shape: f32[1,20], index: 4, kind: input, shape index: {}]
  %s5 = inlined_call_operand.vmem [shape: f32[500,50], index: 5, kind: input, shape index: {}]
  %s6 = inlined_call_operand.vmem [shape: f32[1,50], index: 6, kind: input, shape index: {}]
  %s7 = inlined_call_operand.vmem [shape: f32[50,10], index: 7, kind: input, shape index: {}]
  %s8 = inlined_call_operand.vmem [shape: f32[1,10], index: 8, kind: input, shape index: {}]
  %s9 = inlined_call_operand.hbm [shape: f32[2,1,10], index: 9, kind: output, shape index: {}]
  %s10 = sld [smem:[#allocation0]]
  $region69: #{mnist_classifier_forward.1} parent=0
    _
  %s12 = ssub.s32 1, %s10
  %s13 = scalar_select 0, %s12, %s10
  $region1: #{mnist_classifier_forward.1} parent=0
    #allocation2 [shape = 'u8[1024]{0}', space=vmem, size = 0x400, scoped, tag = 'output window, operand 0']
    #allocation3 [shape = 's32[2]{0}', space=sflag, size = 0x8, scoped, tag = 'scoped memory for mnist_classifier_forward.1']
    %14 = vsyncpa [#allocation3], 0
    %s15 = scalar_lea.sflag [#allocation3], 1
    %16 = vsyncpa %s15, 0
    loop: start=0, step=1, limit=4
    $region2: #{mnist_classifier_forward.1} parent=1 // loop_pre_header
      _
    $region3: #{mnist_classifier_forward.1} parent=1 // loop_header
      %s18 = sphi 0, %s22
      %p19 = scmp.ge.s32.totalorder %s18, 4
      %s28 = sphi 0, %s30
      %s31 = sphi 0, %s28
      %s32 = sphi 0, %s31
      %s48 = sphi 0, %s32
      %s52 = sphi 0, %s52
      %s54 = sphi 0, %s52
      %s55 = sphi 0, %s54
      %s69 = sphi 0, %s55
      %s73 = sphi 0, %s73
      %s75 = sphi 0, %s73
      %s76 = sphi 0, %s75
      %s90 = sphi 0, %s76
      %s94 = sphi 0, %s94
      %s96 = sphi 0, %s94
      %s97 = sphi 0, %s96
      %s111 = sphi 0, %s97
      %s115 = sphi 0, %s115
      %s117 = sphi 0, %s115
      %s118 = sphi 0, %s117
      %s132 = sphi 0, %s118
      %s136 = sphi 0, %s136
      %s138 = sphi 0, %s136
      %s139 = sphi 0, %s138
      %s153 = sphi 0, %s139
      %s157 = sphi 0, %s157
      %s159 = sphi 0, %s157
      %s160 = sphi 0, %s159
      %s174 = sphi 0, %s160
      %s178 = sphi 0, %s178
      %s180 = sphi 0, %s178
      %s181 = sphi 0, %s180
      %s195 = sphi 0, %s181
      %s199 = sphi 0, %s199
      %s201 = sphi 0, %s199
      %s202 = sphi 0, %s201
      %s216 = sphi 0, %s202
      %s222 = sphi 0, %s224
      %s225 = sphi 0, %s222
      %s226 = sphi 0, %s225
      %s242 = sphi 0, %s226
    $region4: #{mnist_classifier_forward.1} parent=1 // loop_header_branch
      %21 = sbr.rel (%p19) target = $region8
    $region5: #{mnist_classifier_forward.1} parent=1 // loop_body
      %s23 = ssub.s32 %s18, 1
      %s24 = ssub.s32 %s18, 2
      %s25 = sadd.s32 %s18, 1
      %s26 = ssub.s32 %s18, %s25
      %p27 = scmp.eq.s32.totalorder %s26, 0
      %s29 = sadd.s32 %s28, 1
      %s30 = scalar_select %p27, %s28, %s29
      %p33 = pneg %p27
      %p34 = scmp.eq.s32.totalorder %s18, 1
      %p35 = por %p33, %p34
      %p36 = scmp.ne.s32.totalorder %s28, %s31
      %p37 = scmp.eq.s32.totalorder %s18, 0
      %p38 = por %p36, %p37
      %p39 = scmp.ne.s32.totalorder %s28, %s31
      %p40 = scmp.eq.s32.totalorder %s23, 1
      %p41 = por %p39, %p40
      %p42 = scmp.ne.s32.totalorder %s31, %s32
      %p43 = scmp.eq.s32.totalorder %s23, 0
      %p44 = por %p42, %p43
      %p45 = scmp.ne.s32.totalorder %s31, %s32
      %p46 = scmp.eq.s32.totalorder %s24, 1
      %p47 = por %p45, %p46
      %p49 = scmp.ne.s32.totalorder %s32, %s48
      %p50 = scmp.eq.s32.totalorder %s24, 0
      %p51 = por %p49, %p50
      %s53 = sadd.s32 %s52, 1
      %p56 = scmp.eq.s32.totalorder %s18, 1
      %p57 = scmp.ne.s32.totalorder %s52, %s54
      %p58 = scmp.eq.s32.totalorder %s18, 0
      %p59 = por %p57, %p58
      %p60 = scmp.ne.s32.totalorder %s52, %s54
      %p61 = scmp.eq.s32.totalorder %s23, 1
      %p62 = por %p60, %p61
      %p63 = scmp.ne.s32.totalorder %s54, %s55
      %p64 = scmp.eq.s32.totalorder %s23, 0
      %p65 = por %p63, %p64
      %p66 = scmp.ne.s32.totalorder %s54, %s55
      %p67 = scmp.eq.s32.totalorder %s24, 1
      %p68 = por %p66, %p67
      %p70 = scmp.ne.s32.totalorder %s55, %s69
      %p71 = scmp.eq.s32.totalorder %s24, 0
      %p72 = por %p70, %p71
      %s74 = sadd.s32 %s73, 1
      %p77 = scmp.eq.s32.totalorder %s18, 1
      %p78 = scmp.ne.s32.totalorder %s73, %s75
      %p79 = scmp.eq.s32.totalorder %s18, 0
      %p80 = por %p78, %p79
      %p81 = scmp.ne.s32.totalorder %s73, %s75
      %p82 = scmp.eq.s32.totalorder %s23, 1
      %p83 = por %p81, %p82
      %p84 = scmp.ne.s32.totalorder %s75, %s76
      %p85 = scmp.eq.s32.totalorder %s23, 0
      %p86 = por %p84, %p85
      %p87 = scmp.ne.s32.totalorder %s75, %s76
      %p88 = scmp.eq.s32.totalorder %s24, 1
      %p89 = por %p87, %p88
      %p91 = scmp.ne.s32.totalorder %s76, %s90
      %p92 = scmp.eq.s32.totalorder %s24, 0
      %p93 = por %p91, %p92
      %s95 = sadd.s32 %s94, 1
      %p98 = scmp.eq.s32.totalorder %s18, 1
      %p99 = scmp.ne.s32.totalorder %s94, %s96
      %p100 = scmp.eq.s32.totalorder %s18, 0
      %p101 = por %p99, %p100
      %p102 = scmp.ne.s32.totalorder %s94, %s96
      %p103 = scmp.eq.s32.totalorder %s23, 1
      %p104 = por %p102, %p103
      %p105 = scmp.ne.s32.totalorder %s96, %s97
      %p106 = scmp.eq.s32.totalorder %s23, 0
      %p107 = por %p105, %p106
      %p108 = scmp.ne.s32.totalorder %s96, %s97
      %p109 = scmp.eq.s32.totalorder %s24, 1
      %p110 = por %p108, %p109
      %p112 = scmp.ne.s32.totalorder %s97, %s111
      %p113 = scmp.eq.s32.totalorder %s24, 0
      %p114 = por %p112, %p113
      %s116 = sadd.s32 %s115, 1
      %p119 = scmp.eq.s32.totalorder %s18, 1
      %p120 = scmp.ne.s32.totalorder %s115, %s117
      %p121 = scmp.eq.s32.totalorder %s18, 0
      %p122 = por %p120, %p121
      %p123 = scmp.ne.s32.totalorder %s115, %s117
      %p124 = scmp.eq.s32.totalorder %s23, 1
      %p125 = por %p123, %p124
      %p126 = scmp.ne.s32.totalorder %s117, %s118
      %p127 = scmp.eq.s32.totalorder %s23, 0
      %p128 = por %p126, %p127
      %p129 = scmp.ne.s32.totalorder %s117, %s118
      %p130 = scmp.eq.s32.totalorder %s24, 1
      %p131 = por %p129, %p130
      %p133 = scmp.ne.s32.totalorder %s118, %s132
      %p134 = scmp.eq.s32.totalorder %s24, 0
      %p135 = por %p133, %p134
      %s137 = sadd.s32 %s136, 1
      %p140 = scmp.eq.s32.totalorder %s18, 1
      %p141 = scmp.ne.s32.totalorder %s136, %s138
      %p142 = scmp.eq.s32.totalorder %s18, 0
      %p143 = por %p141, %p142
      %p144 = scmp.ne.s32.totalorder %s136, %s138
      %p145 = scmp.eq.s32.totalorder %s23, 1
      %p146 = por %p144, %p145
      %p147 = scmp.ne.s32.totalorder %s138, %s139
      %p148 = scmp.eq.s32.totalorder %s23, 0
      %p149 = por %p147, %p148
      %p150 = scmp.ne.s32.totalorder %s138, %s139
      %p151 = scmp.eq.s32.totalorder %s24, 1
      %p152 = por %p150, %p151
      %p154 = scmp.ne.s32.totalorder %s139, %s153
      %p155 = scmp.eq.s32.totalorder %s24, 0
      %p156 = por %p154, %p155
      %s158 = sadd.s32 %s157, 1
      %p161 = scmp.eq.s32.totalorder %s18, 1
      %p162 = scmp.ne.s32.totalorder %s157, %s159
      %p163 = scmp.eq.s32.totalorder %s18, 0
      %p164 = por %p162, %p163
      %p165 = scmp.ne.s32.totalorder %s157, %s159
      %p166 = scmp.eq.s32.totalorder %s23, 1
      %p167 = por %p165, %p166
      %p168 = scmp.ne.s32.totalorder %s159, %s160
      %p169 = scmp.eq.s32.totalorder %s23, 0
      %p170 = por %p168, %p169
      %p171 = scmp.ne.s32.totalorder %s159, %s160
      %p172 = scmp.eq.s32.totalorder %s24, 1
      %p173 = por %p171, %p172
      %p175 = scmp.ne.s32.totalorder %s160, %s174
      %p176 = scmp.eq.s32.totalorder %s24, 0
      %p177 = por %p175, %p176
      %s179 = sadd.s32 %s178, 1
      %p182 = scmp.eq.s32.totalorder %s18, 1
      %p183 = scmp.ne.s32.totalorder %s178, %s180
      %p184 = scmp.eq.s32.totalorder %s18, 0
      %p185 = por %p183, %p184
      %p186 = scmp.ne.s32.totalorder %s178, %s180
      %p187 = scmp.eq.s32.totalorder %s23, 1
      %p188 = por %p186, %p187
      %p189 = scmp.ne.s32.totalorder %s180, %s181
      %p190 = scmp.eq.s32.totalorder %s23, 0
      %p191 = por %p189, %p190
      %p192 = scmp.ne.s32.totalorder %s180, %s181
      %p193 = scmp.eq.s32.totalorder %s24, 1
      %p194 = por %p192, %p193
      %p196 = scmp.ne.s32.totalorder %s181, %s195
      %p197 = scmp.eq.s32.totalorder %s24, 0
      %p198 = por %p196, %p197
      %s200 = sadd.s32 %s199, 1
      %p203 = scmp.eq.s32.totalorder %s18, 1
      %p204 = scmp.ne.s32.totalorder %s199, %s201
      %p205 = scmp.eq.s32.totalorder %s18, 0
      %p206 = por %p204, %p205
      %p207 = scmp.ne.s32.totalorder %s199, %s201
      %p208 = scmp.eq.s32.totalorder %s23, 1
      %p209 = por %p207, %p208
      %p210 = scmp.ne.s32.totalorder %s201, %s202
      %p211 = scmp.eq.s32.totalorder %s23, 0
      %p212 = por %p210, %p211
      %p213 = scmp.ne.s32.totalorder %s201, %s202
      %p214 = scmp.eq.s32.totalorder %s24, 1
      %p215 = por %p213, %p214
      %p217 = scmp.ne.s32.totalorder %s202, %s216
      %p218 = scmp.eq.s32.totalorder %s24, 0
      %p219 = por %p217, %p218
      %s220 = ssub.s32 %s18, %s25
      %p221 = scmp.eq.s32.totalorder %s220, 0
      %s223 = sadd.s32 %s222, 1
      %s224 = scalar_select %p221, %s222, %s223
      %p227 = pneg %p221
      %p228 = scmp.eq.s32.totalorder %s18, 1
      %p229 = por %p227, %p228
      %p230 = scmp.ne.s32.totalorder %s222, %s225
      %p231 = scmp.eq.s32.totalorder %s18, 0
      %p232 = por %p230, %p231
      %p233 = scmp.ne.s32.totalorder %s222, %s225
      %p234 = scmp.eq.s32.totalorder %s23, 1
      %p235 = por %p233, %p234
      %p236 = scmp.ne.s32.totalorder %s225, %s226
      %p237 = scmp.eq.s32.totalorder %s23, 0
      %p238 = por %p236, %p237
      %p239 = scmp.ne.s32.totalorder %s225, %s226
      %p240 = scmp.eq.s32.totalorder %s24, 1
      %p241 = por %p239, %p240
      %p243 = scmp.ne.s32.totalorder %s226, %s242
      %p244 = scmp.eq.s32.totalorder %s24, 0
      %p245 = por %p243, %p244
      %p246 = scmp.le.s32.totalorder 1, %s18
      %p247 = scmp.lt.s32.totalorder %s18, 3
      %p248 = pnand %p246, %p247
      %p249 = pneg %p248
      // Predicated region
      $region9: #{mnist_classifier_forward.1} parent=5 // pred_check
        _
      $region10: #{mnist_classifier_forward.1} parent=5 // pred_check_branch
        %251 = sbr.rel (%p248) target = $region12
      $region11: #{mnist_classifier_forward.1} parent=5 // pred_region
        %s252 = ssub.s32 %s18, 1
        // Predicated region
        $region13: #{mnist_classifier_forward.1} parent=11 // pred_check
          %p253 = pneg %p65
        $region14: #{mnist_classifier_forward.1} parent=11 // pred_check_branch
          %255 = sbr.rel (%p253) target = $region16
        $region15: #{mnist_classifier_forward.1} parent=11 // pred_region
          _
        $region16: #{mnist_classifier_forward.1} parent=11 // pred_fallthru
          _
        // Predicated region
        $region17: #{mnist_classifier_forward.1} parent=11 // pred_check
          %p256 = pneg %p86
        $region18: #{mnist_classifier_forward.1} parent=11 // pred_check_branch
          %258 = sbr.rel (%p256) target = $region20
        $region19: #{mnist_classifier_forward.1} parent=11 // pred_region
          _
        $region20: #{mnist_classifier_forward.1} parent=11 // pred_fallthru
          _
        // Predicated region
        $region21: #{mnist_classifier_forward.1} parent=11 // pred_check
          %p259 = pneg %p107
        $region22: #{mnist_classifier_forward.1} parent=11 // pred_check_branch
          %261 = sbr.rel (%p259) target = $region24
        $region23: #{mnist_classifier_forward.1} parent=11 // pred_region
          _
        $region24: #{mnist_classifier_forward.1} parent=11 // pred_fallthru
          _
        // Predicated region
        $region25: #{mnist_classifier_forward.1} parent=11 // pred_check
          %p262 = pneg %p128
        $region26: #{mnist_classifier_forward.1} parent=11 // pred_check_branch
          %264 = sbr.rel (%p262) target = $region28
        $region27: #{mnist_classifier_forward.1} parent=11 // pred_region
          _
        $region28: #{mnist_classifier_forward.1} parent=11 // pred_fallthru
          _
        // Predicated region
        $region29: #{mnist_classifier_forward.1} parent=11 // pred_check
          %p265 = pneg %p149
        $region30: #{mnist_classifier_forward.1} parent=11 // pred_check_branch
          %267 = sbr.rel (%p265) target = $region32
        $region31: #{mnist_classifier_forward.1} parent=11 // pred_region
          _
        $region32: #{mnist_classifier_forward.1} parent=11 // pred_fallthru
          _
        // Predicated region
        $region33: #{mnist_classifier_forward.1} parent=11 // pred_check
          %p268 = pneg %p170
        $region34: #{mnist_classifier_forward.1} parent=11 // pred_check_branch
          %270 = sbr.rel (%p268) target = $region36
        $region35: #{mnist_classifier_forward.1} parent=11 // pred_region
          _
        $region36: #{mnist_classifier_forward.1} parent=11 // pred_fallthru
          _
        // Predicated region
        $region37: #{mnist_classifier_forward.1} parent=11 // pred_check
          %p271 = pneg %p191
        $region38: #{mnist_classifier_forward.1} parent=11 // pred_check_branch
          %273 = sbr.rel (%p271) target = $region40
        $region39: #{mnist_classifier_forward.1} parent=11 // pred_region
          _
        $region40: #{mnist_classifier_forward.1} parent=11 // pred_fallthru
          _
        // Predicated region
        $region41: #{mnist_classifier_forward.1} parent=11 // pred_check
          %p274 = pneg %p212
        $region42: #{mnist_classifier_forward.1} parent=11 // pred_check_branch
          %276 = sbr.rel (%p274) target = $region44
        $region43: #{mnist_classifier_forward.1} parent=11 // pred_region
          _
        $region44: #{mnist_classifier_forward.1} parent=11 // pred_fallthru
          _
      $region12: #{mnist_classifier_forward.1} parent=5 // pred_fallthru
        _
      %p277 = scmp.lt.s32.totalorder %s18, 2
      // Predicated region
      $region45: #{mnist_classifier_forward.1} parent=5 // pred_check
        %p278 = pneg %p277
      $region46: #{mnist_classifier_forward.1} parent=5 // pred_check_branch
        %280 = sbr.rel (%p278) target = $region48
      $region47: #{mnist_classifier_forward.1} parent=5 // pred_region
        // Predicated region
        $region49: #{mnist_classifier_forward.1} parent=47 // pred_check
          %p281 = pneg %p38
        $region50: #{mnist_classifier_forward.1} parent=47 // pred_check_branch
          %283 = sbr.rel (%p281) target = $region52
        $region51: #{mnist_classifier_forward.1} parent=47 // pred_region
          %p284 = scmp.lt.s32.totalorder %s18, 1
          %s285 = scalar_select %p284, %s18, 1
          %s286 = smul.addr %s285, 10
          %s287 = smul.addr %s286, 8
          %s288 = scalar_lea.vmem %s0, %s287
        $region52: #{mnist_classifier_forward.1} parent=47 // pred_fallthru
          _
      $region48: #{mnist_classifier_forward.1} parent=5 // pred_fallthru
        _
      %p289 = scmp.le.s32.totalorder 1, %s18
      %p290 = scmp.lt.s32.totalorder %s18, 3
      %p291 = pnand %p289, %p290
      %p292 = pneg %p291
      // Predicated region
      $region53: #{mnist_classifier_forward.1} parent=5 // pred_check
        _
      $region54: #{mnist_classifier_forward.1} parent=5 // pred_check_branch
        %294 = sbr.rel (%p291) target = $region56
      $region55: #{mnist_classifier_forward.1} parent=5 // pred_region
        %s295 = ssub.s32 %s18, 1
        %p296 = scmp.lt.s32.totalorder %s23, 1
        %s297 = scalar_select %p296, %s23, 1
        %s298 = smul.addr %s297, 10
        %s299 = smul.addr %s298, 8
        %s300 = scalar_lea.vmem %s0, %s299
        %p301 = pneg %p44
        %p302 = pneg %p41
        %p303 = pneg %p65
        %p304 = pneg %p62
        %p305 = pneg %p86
        %p306 = pneg %p83
        %p307 = pneg %p107
        %p308 = pneg %p104
        %p309 = pneg %p128
        %p310 = pneg %p125
        %p311 = pneg %p149
        %p312 = pneg %p146
        %p313 = pneg %p170
        %p314 = pneg %p167
        %p315 = pneg %p191
        %p316 = pneg %p188
        %p317 = pneg %p212
        %p318 = pneg %p209
        %p319 = pneg %p238
        %p320 = pneg %p235
        %s321 = sand.u32 %s225, 1
        %s322 = scalar_lea.sflag [#allocation3], %s321
        %s323 = sand.u32 %s225, 1
        %s324 = scalar_lea.vmem [#allocation2], %s323
        %p325 = scmp.lt.s32.totalorder %s23, 1
        %s326 = scalar_select %p325, %s23, 1
        %s327 = smul.addr %s326, 10
        %s328 = smul.addr %s327, 8
        %s329 = scalar_lea.vmem %s0, %s328
        %v330 = vld [vmem:[%s329] sm:$0xff]
        %v331 = vld [vmem:[%s329 + $0x8] sm:$0xff]
        %v332 = vld [vmem:[%s329 + $0x10] sm:$0xff]
        %v333 = vld [vmem:[%s329 + $0x18] sm:$0xff]
        %v334 = vld [vmem:[%s329 + $0x20] sm:$0xff]
        %v335 = vld [vmem:[%s329 + $0x28] sm:$0xff]
        %v336 = vld [vmem:[%s329 + $0x30] sm:$0xff]
        %v337 = vld [vmem:[%s329 + $0x38] sm:$0xff]
        %v338 = vld [vmem:[%s329 + $0x40] sm:$0xff]
        %v339 = vld [vmem:[%s329 + $0x48] sm:$0xff]
        %vm349 = vcmask 1046528
        %v350 = vrot.slane %v330, 1
        %v351 = vrot.slane %v331, 1
        %v352 = vsel %vm349, %v350, %v351
        %v353 = vrot.slane %v332, 1
        %v354 = vsel %vm349, %v351, %v353
        %v355 = vrot.slane %v333, 1
        %v356 = vsel %vm349, %v353, %v355
        %v357 = vrot.slane %v334, 1
        %v358 = vsel %vm349, %v355, %v357
        %v359 = vrot.slane %v335, 1
        %v360 = vsel %vm349, %v357, %v359
        %v361 = vrot.slane %v336, 1
        %v362 = vsel %vm349, %v359, %v361
        %v363 = vrot.slane %v337, 1
        %v364 = vsel %vm349, %v361, %v363
        %v365 = vrot.slane %v338, 1
        %v366 = vsel %vm349, %v363, %v365
        %367 = vrot.lane.b32.xlu0 %v352, 16
        %v368 = vpop.permute.xlu0 %367
        %369 = vrot.lane.b32.xlu0 %v354, 16
        %v370 = vpop.permute.xlu0 %369
        %371 = vrot.lane.b32.xlu0 %v356, 16
        %v372 = vpop.permute.xlu0 %371
        %373 = vrot.lane.b32.xlu0 %v358, 16
        %v374 = vpop.permute.xlu0 %373
        %375 = vrot.lane.b32.xlu0 %v360, 16
        %v376 = vpop.permute.xlu0 %375
        %377 = vrot.lane.b32.xlu0 %v362, 16
        %v378 = vpop.permute.xlu0 %377
        %379 = vrot.lane.b32.xlu0 %v364, 16
        %v380 = vpop.permute.xlu0 %379
        %381 = vrot.lane.b32.xlu0 %v366, 16
        %v382 = vpop.permute.xlu0 %381
        %391 = vrot.lane.b32.xlu0 %v331, 32
        %v392 = vpop.permute.xlu0 %391
        %393 = vrot.lane.b32.xlu0 %v332, 32
        %v394 = vpop.permute.xlu0 %393
        %395 = vrot.lane.b32.xlu0 %v333, 32
        %v396 = vpop.permute.xlu0 %395
        %397 = vrot.lane.b32.xlu0 %v334, 32
        %v398 = vpop.permute.xlu0 %397
        %399 = vrot.lane.b32.xlu0 %v335, 32
        %v400 = vpop.permute.xlu0 %399
        %401 = vrot.lane.b32.xlu0 %v336, 32
        %v402 = vpop.permute.xlu0 %401
        %403 = vrot.lane.b32.xlu0 %v337, 32
        %v404 = vpop.permute.xlu0 %403
        %405 = vrot.lane.b32.xlu0 %v338, 32
        %v406 = vpop.permute.xlu0 %405
        %v416 = vrot.slane %v339, 1
        %v417 = vsel %vm349, %v365, %v416
        %418 = vrot.lane.b32.xlu0 %v354, 48
        %v419 = vpop.permute.xlu0 %418
        %420 = vrot.lane.b32.xlu0 %v356, 48
        %v421 = vpop.permute.xlu0 %420
        %422 = vrot.lane.b32.xlu0 %v358, 48
        %v423 = vpop.permute.xlu0 %422
        %424 = vrot.lane.b32.xlu0 %v360, 48
        %v425 = vpop.permute.xlu0 %424
        %426 = vrot.lane.b32.xlu0 %v362, 48
        %v427 = vpop.permute.xlu0 %426
        %428 = vrot.lane.b32.xlu0 %v364, 48
        %v429 = vpop.permute.xlu0 %428
        %430 = vrot.lane.b32.xlu0 %v366, 48
        %v431 = vpop.permute.xlu0 %430
        %432 = vrot.lane.b32.xlu0 %v417, 48
        %v433 = vpop.permute.xlu0 %432
        %vm442 = vcmask 130048
        %v443 = vsel %vm442, %v330, %v368
        %v444 = vsel %vm442, %v331, %v370
        %v445 = vsel %vm442, %v332, %v372
        %v446 = vsel %vm442, %v333, %v374
        %v447 = vsel %vm442, %v334, %v376
        %v448 = vsel %vm442, %v335, %v378
        %v449 = vsel %vm442, %v336, %v380
        %v450 = vsel %vm442, %v337, %v382
        %vm451 = vcmask 261120
        %v452 = vsel %vm451, %v443, %v392
        %v453 = vsel %vm451, %v444, %v394
        %v454 = vsel %vm451, %v445, %v396
        %v455 = vsel %vm451, %v446, %v398
        %v456 = vsel %vm451, %v447, %v400
        %v457 = vsel %vm451, %v448, %v402
        %v458 = vsel %vm451, %v449, %v404
        %v459 = vsel %vm451, %v450, %v406
        %vm460 = vcmask 392192
        %v461 = vsel %vm460, %v452, %v419
        %v462 = vsel %vm460, %v453, %v421
        %v463 = vsel %vm460, %v454, %v423
        %v464 = vsel %vm460, %v455, %v425
        %v465 = vsel %vm460, %v456, %v427
        %v466 = vsel %vm460, %v457, %v429
        %v467 = vsel %vm460, %v458, %v431
        %v468 = vsel %vm460, %v459, %v433
        %v469 = vld [vmem:[%s1] sm:$0xff]
        %v470 = vld [vmem:[%s1 + $0x8] sm:$0xff]
        %v471 = vld [vmem:[%s1 + $0x10] sm:$0xff]
        %v472 = vld [vmem:[%s1 + $0x18] sm:$0xff]
        %v473 = vld [vmem:[%s1 + $0x20] sm:$0xff]
        %v474 = vld [vmem:[%s1 + $0x28] sm:$0xff]
        %v475 = vld [vmem:[%s1 + $0x30] sm:$0xff]
        %v476 = vld [vmem:[%s1 + $0x38] sm:$0xff]
        %v477 = vld [vmem:[%s1 + $0x40] sm:$0xff]
        %v478 = vld [vmem:[%s1 + $0x48] sm:$0xff]
        %v479 = vld [vmem:[%s1 + $0x50] sm:$0xff]
        %v480 = vld [vmem:[%s1 + $0x58] sm:$0xff]
        %v481 = vld [vmem:[%s1 + $0x60] sm:$0xff]
        %v482 = vld [vmem:[%s1 + $0x68] sm:$0xff]
        %v483 = vld [vmem:[%s1 + $0x70] sm:$0xff]
        %v484 = vld [vmem:[%s1 + $0x78] sm:$0xff]
        %vm485 = vcmask 523264
        %v487 = vsel %vm485, %v461, 0
        %v490 = vsel %vm485, %v462, 0
        %v493 = vsel %vm485, %v463, 0
        %v496 = vsel %vm485, %v464, 0
        %v499 = vsel %vm485, %v465, 0
        %v502 = vsel %vm485, %v466, 0
        %v505 = vsel %vm485, %v467, 0
        %v508 = vsel %vm485, %v468, 0
        %510 = vmatprep.subr.mxu0 %v470
        %511 = vmatpush1.msra.mxu0 %v469
        %512 = vmatprep.subr.mxu0 %v472
        %513 = vmatpush1.msra.mxu0 %v471
        %514 = vmatprep.subr.mxu0 %v474
        %515 = vmatpush1.msra.mxu0 %v473
        %516 = vmatprep.subr.mxu0 %v476
        %517 = vmatpush1.msra.mxu0 %v475
        %518 = vmatprep.subr.mxu0 %v478
        %519 = vmatpush1.msra.mxu0 %v477
        %520 = vmatprep.subr.mxu0 %v480
        %521 = vmatpush1.msra.mxu0 %v479
        %522 = vmatprep.subr.mxu0 %v482
        %523 = vmatpush1.msra.mxu0 %v481
        %524 = vmatprep.subr.mxu0 %v484
        %525 = vmatpush1.msra.mxu0 %v483
        %526 = vmatprep.subr.mxu0 0.0
        %527 = vmatpush1.msra.mxu0 0.0
        %528 = vmatprep.subr.mxu0 0.0
        %529 = vmatpush1.msra.mxu0 0.0
        %530 = vmatprep.subr.mxu0 0.0
        %531 = vmatpush1.msra.mxu0 0.0
        %532 = vmatprep.subr.mxu0 0.0
        %533 = vmatpush1.msra.mxu0 0.0
        %534 = vmatprep.subr.mxu0 0.0
        %535 = vmatpush1.msra.mxu0 0.0
        %536 = vmatprep.subr.mxu0 0.0
        %537 = vmatpush1.msra.mxu0 0.0
        %538 = vmatprep.subr.mxu0 0.0
        %539 = vmatpush1.msra.mxu0 0.0
        %540 = vmatprep.subr.mxu0 0.0
        %541 = vmatpush1.msra.mxu0 0.0
        %542 = vmatprep.subr.mxu0 0.0
        %543 = vmatpush1.msra.mxu0 0.0
        %544 = vmatprep.subr.mxu0 0.0
        %545 = vmatpush1.msra.mxu0 0.0
        %546 = vmatprep.subr.mxu0 0.0
        %547 = vmatpush1.msra.mxu0 0.0
        %548 = vmatprep.subr.mxu0 0.0
        %549 = vmatpush1.msra.mxu0 0.0
        %550 = vmatprep.subr.mxu0 0.0
        %551 = vmatpush1.msra.mxu0 0.0
        %552 = vmatprep.subr.mxu0 0.0
        %553 = vmatpush1.msra.mxu0 0.0
        %554 = vmatprep.subr.mxu0 0.0
        %555 = vmatpush1.msra.mxu0 0.0
        %556 = vmatprep.subr.mxu0 0.0
        %557 = vmatpush1.msra.mxu0 0.0
        %558 = vmatprep.subr.mxu0 0.0
        %559 = vmatpush1.msra.mxu0 0.0
        %560 = vmatprep.subr.mxu0 0.0
        %561 = vmatpush1.msra.mxu0 0.0
        %562 = vmatprep.subr.mxu0 0.0
        %563 = vmatpush1.msra.mxu0 0.0
        %564 = vmatprep.subr.mxu0 0.0
        %565 = vmatpush1.msra.mxu0 0.0
        %566 = vmatprep.subr.mxu0 0.0
        %567 = vmatpush1.msra.mxu0 0.0
        %568 = vmatprep.subr.mxu0 0.0
        %569 = vmatpush1.msra.mxu0 0.0
        %570 = vmatprep.subr.mxu0 0.0
        %571 = vmatpush1.msra.mxu0 0.0
        %572 = vmatprep.subr.mxu0 0.0
        %573 = vmatpush1.msra.mxu0 0.0
        %574 = vmatprep.mubr.f32.mxu0 0.0
        %575 = vmatmul.mubr.f32.gmra.mrb[0].mxu0 %v487
        %v576 = vpop.f32.mrb[0].mxu0
        %v577 = vadd.f32 0.0, %v576
        %v578 = vpop.f32.mrb[0].mxu0
        %v579 = vadd.f32 0.0, %v578
        %580 = vmatprep.mubr.f32.mxu0 0.0
        %581 = vmatmul.mubr.f32.gmra.mrb[0].mxu0 %v490
        %v582 = vpop.f32.mrb[0].mxu0
        %v583 = vadd.f32 0.0, %v582
        %v584 = vpop.f32.mrb[0].mxu0
        %v585 = vadd.f32 0.0, %v584
        %586 = vmatprep.mubr.f32.mxu0 0.0
        %587 = vmatmul.mubr.f32.gmra.mrb[0].mxu0 %v493
        %v588 = vpop.f32.mrb[0].mxu0
        %v589 = vadd.f32 0.0, %v588
        %v590 = vpop.f32.mrb[0].mxu0
        %v591 = vadd.f32 0.0, %v590
        %592 = vmatprep.mubr.f32.mxu0 0.0
        %593 = vmatmul.mubr.f32.gmra.mrb[0].mxu0 %v496
        %v594 = vpop.f32.mrb[0].mxu0
        %v595 = vadd.f32 0.0, %v594
        %v596 = vpop.f32.mrb[0].mxu0
        %v597 = vadd.f32 0.0, %v596
        %598 = vmatprep.mubr.f32.mxu0 0.0
        %599 = vmatmul.mubr.f32.gmra.mrb[0].mxu0 %v499
        %v600 = vpop.f32.mrb[0].mxu0
        %v601 = vadd.f32 0.0, %v600
        %v602 = vpop.f32.mrb[0].mxu0
        %v603 = vadd.f32 0.0, %v602
        %604 = vmatprep.mubr.f32.mxu0 0.0
        %605 = vmatmul.mubr.f32.gmra.mrb[0].mxu0 %v502
        %v606 = vpop.f32.mrb[0].mxu0
        %v607 = vadd.f32 0.0, %v606
        %v608 = vpop.f32.mrb[0].mxu0
        %v609 = vadd.f32 0.0, %v608
        %610 = vmatprep.mubr.f32.mxu0 0.0
        %611 = vmatmul.mubr.f32.gmra.mrb[0].mxu0 %v505
        %v612 = vpop.f32.mrb[0].mxu0
        %v613 = vadd.f32 0.0, %v612
        %v614 = vpop.f32.mrb[0].mxu0
        %v615 = vadd.f32 0.0, %v614
        %616 = vmatprep.mubr.f32.mxu0 0.0
        %617 = vmatmul.mubr.f32.gmra.mrb[0].mxu0 %v508
        %v618 = vpop.f32.mrb[0].mxu0
        %v619 = vadd.f32 0.0, %v618
        %v620 = vpop.f32.mrb[0].mxu0
        %v621 = vadd.f32 0.0, %v620
        %622 = vdwg.mxu0
        %631 = vrot.lane.b32.xlu0 %v577, 118
        %v632 = vpop.permute.xlu0 %631
        %633 = vrot.lane.b32.xlu0 %v583, 118
        %v634 = vpop.permute.xlu0 %633
        %635 = vrot.lane.b32.xlu0 %v589, 118
        %v636 = vpop.permute.xlu0 %635
        %637 = vrot.lane.b32.xlu0 %v595, 118
        %v638 = vpop.permute.xlu0 %637
        %639 = vrot.lane.b32.xlu0 %v601, 118
        %v640 = vpop.permute.xlu0 %639
        %641 = vrot.lane.b32.xlu0 %v607, 118
        %v642 = vpop.permute.xlu0 %641
        %643 = vrot.lane.b32.xlu0 %v613, 118
        %v644 = vpop.permute.xlu0 %643
        %645 = vrot.lane.b32.xlu0 %v619, 118
        %v646 = vpop.permute.xlu0 %645
        %v655 = vmax.f32 %v577, %v632
        %v656 = vmax.f32 %v583, %v634
        %v657 = vmax.f32 %v589, %v636
        %v658 = vmax.f32 %v595, %v638
        %v659 = vmax.f32 %v601, %v640
        %v660 = vmax.f32 %v607, %v642
        %v661 = vmax.f32 %v613, %v644
        %v662 = vmax.f32 %v619, %v646
        %663 = vrot.lane.b32.xlu0 %v577, 108
        %v664 = vpop.permute.xlu0 %663
        %665 = vrot.lane.b32.xlu0 %v583, 108
        %v666 = vpop.permute.xlu0 %665
        %667 = vrot.lane.b32.xlu0 %v589, 108
        %v668 = vpop.permute.xlu0 %667
        %669 = vrot.lane.b32.xlu0 %v595, 108
        %v670 = vpop.permute.xlu0 %669
        %671 = vrot.lane.b32.xlu0 %v601, 108
        %v672 = vpop.permute.xlu0 %671
        %673 = vrot.lane.b32.xlu0 %v607, 108
        %v674 = vpop.permute.xlu0 %673
        %675 = vrot.lane.b32.xlu0 %v613, 108
        %v676 = vpop.permute.xlu0 %675
        %677 = vrot.lane.b32.xlu0 %v619, 108
        %v678 = vpop.permute.xlu0 %677
        %v687 = vmax.f32 %v655, %v664
        %v688 = vmax.f32 %v656, %v666
        %v689 = vmax.f32 %v657, %v668
        %v690 = vmax.f32 %v658, %v670
        %v691 = vmax.f32 %v659, %v672
        %v692 = vmax.f32 %v660, %v674
        %v693 = vmax.f32 %v661, %v676
        %v694 = vmax.f32 %v662, %v678
        %695 = vrot.lane.b32.xlu0 %v577, 98
        %v696 = vpop.permute.xlu0 %695
        %697 = vrot.lane.b32.xlu0 %v583, 98
        %v698 = vpop.permute.xlu0 %697
        %699 = vrot.lane.b32.xlu0 %v589, 98
        %v700 = vpop.permute.xlu0 %699
        %701 = vrot.lane.b32.xlu0 %v595, 98
        %v702 = vpop.permute.xlu0 %701
        %703 = vrot.lane.b32.xlu0 %v601, 98
        %v704 = vpop.permute.xlu0 %703
        %705 = vrot.lane.b32.xlu0 %v607, 98
        %v706 = vpop.permute.xlu0 %705
        %707 = vrot.lane.b32.xlu0 %v613, 98
        %v708 = vpop.permute.xlu0 %707
        %709 = vrot.lane.b32.xlu0 %v619, 98
        %v710 = vpop.permute.xlu0 %709
        %v719 = vmax.f32 %v687, %v696
        %v720 = vmax.f32 %v688, %v698
        %v721 = vmax.f32 %v689, %v700
        %v722 = vmax.f32 %v690, %v702
        %v723 = vmax.f32 %v691, %v704
        %v724 = vmax.f32 %v692, %v706
        %v725 = vmax.f32 %v693, %v708
        %v726 = vmax.f32 %v694, %v710
        %v727 = vld [vmem:[%s2] sm:$0x1]
        %v729 = vlaneseq
        %v730 = vshrl.u32 %v729, 7
        %v731 = vsub.s32 0, %v730
        %v732 = vrot.slane %v727, %v731
        %v734 = vadd.f32 %v719, %v732
        %v735 = vadd.f32 %v720, %v732
        %v736 = vadd.f32 %v721, %v732
        %v737 = vadd.f32 %v722, %v732
        %v738 = vadd.f32 %v723, %v732
        %v739 = vadd.f32 %v724, %v732
        %v740 = vadd.f32 %v725, %v732
        %v741 = vadd.f32 %v726, %v732
        %v742 = vmax.f32 %v734, 0.0
        %v743 = vmax.f32 %v735, 0.0
        %v744 = vmax.f32 %v736, 0.0
        %v745 = vmax.f32 %v737, 0.0
        %v746 = vmax.f32 %v738, 0.0
        %v747 = vmax.f32 %v739, 0.0
        %v748 = vmax.f32 %v740, 0.0
        %v749 = vmax.f32 %v741, 0.0
        %750 = vrot.lane.b32.xlu0 %v732, 40
        %v751 = vpop.permute.xlu0 %750
        %v753 = vadd.f32 %v719, %v751
        %v754 = vadd.f32 %v720, %v751
        %v755 = vadd.f32 %v721, %v751
        %v756 = vadd.f32 %v722, %v751
        %v757 = vadd.f32 %v723, %v751
        %v758 = vadd.f32 %v724, %v751
        %v759 = vadd.f32 %v725, %v751
        %v760 = vadd.f32 %v726, %v751
        %v761 = vmax.f32 %v753, 0.0
        %v762 = vmax.f32 %v754, 0.0
        %v763 = vmax.f32 %v755, 0.0
        %v764 = vmax.f32 %v756, 0.0
        %v765 = vmax.f32 %v757, 0.0
        %v766 = vmax.f32 %v758, 0.0
        %v767 = vmax.f32 %v759, 0.0
        %v768 = vmax.f32 %v760, 0.0
        %769 = vrot.lane.b32.xlu0 %v732, 80
        %v770 = vpop.permute.xlu0 %769
        %v772 = vadd.f32 %v719, %v770
        %v773 = vadd.f32 %v720, %v770
        %v774 = vadd.f32 %v721, %v770
        %v775 = vadd.f32 %v722, %v770
        %v776 = vadd.f32 %v723, %v770
        %v777 = vadd.f32 %v724, %v770
        %v778 = vadd.f32 %v725, %v770
        %v779 = vadd.f32 %v726, %v770
        %v780 = vmax.f32 %v772, 0.0
        %v781 = vmax.f32 %v773, 0.0
        %v782 = vmax.f32 %v774, 0.0
        %v783 = vmax.f32 %v775, 0.0
        %v784 = vmax.f32 %v776, 0.0
        %v785 = vmax.f32 %v777, 0.0
        %v786 = vmax.f32 %v778, 0.0
        %v787 = vmax.f32 %v779, 0.0
        %796 = vrot.lane.b32.xlu0 %v579, 118
        %v797 = vpop.permute.xlu0 %796
        %798 = vrot.lane.b32.xlu0 %v585, 118
        %v799 = vpop.permute.xlu0 %798
        %800 = vrot.lane.b32.xlu0 %v591, 118
        %v801 = vpop.permute.xlu0 %800
        %802 = vrot.lane.b32.xlu0 %v597, 118
        %v803 = vpop.permute.xlu0 %802
        %804 = vrot.lane.b32.xlu0 %v603, 118
        %v805 = vpop.permute.xlu0 %804
        %806 = vrot.lane.b32.xlu0 %v609, 118
        %v807 = vpop.permute.xlu0 %806
        %808 = vrot.lane.b32.xlu0 %v615, 118
        %v809 = vpop.permute.xlu0 %808
        %810 = vrot.lane.b32.xlu0 %v621, 118
        %v811 = vpop.permute.xlu0 %810
        %v820 = vmax.f32 %v577, %v797
        %v821 = vmax.f32 %v579, %v797
        %v822 = vmax.f32 %v583, %v799
        %v823 = vmax.f32 %v585, %v799
        %v824 = vmax.f32 %v589, %v801
        %v825 = vmax.f32 %v591, %v801
        %v826 = vmax.f32 %v595, %v803
        %v827 = vmax.f32 %v597, %v803
        %v828 = vmax.f32 %v601, %v805
        %v829 = vmax.f32 %v603, %v805
        %v830 = vmax.f32 %v607, %v807
        %v831 = vmax.f32 %v609, %v807
        %v832 = vmax.f32 %v613, %v809
        %v833 = vmax.f32 %v615, %v809
        %v834 = vmax.f32 %v619, %v811
        %v835 = vmax.f32 %v621, %v811
        %836 = vrot.lane.b32.xlu0 %v579, 108
        %v837 = vpop.permute.xlu0 %836
        %838 = vrot.lane.b32.xlu0 %v585, 108
        %v839 = vpop.permute.xlu0 %838
        %840 = vrot.lane.b32.xlu0 %v591, 108
        %v841 = vpop.permute.xlu0 %840
        %842 = vrot.lane.b32.xlu0 %v597, 108
        %v843 = vpop.permute.xlu0 %842
        %844 = vrot.lane.b32.xlu0 %v603, 108
        %v845 = vpop.permute.xlu0 %844
        %846 = vrot.lane.b32.xlu0 %v609, 108
        %v847 = vpop.permute.xlu0 %846
        %848 = vrot.lane.b32.xlu0 %v615, 108
        %v849 = vpop.permute.xlu0 %848
        %850 = vrot.lane.b32.xlu0 %v621, 108
        %v851 = vpop.permute.xlu0 %850
        %v860 = vmax.f32 %v820, %v837
        %v861 = vmax.f32 %v821, %v837
        %v862 = vmax.f32 %v822, %v839
        %v863 = vmax.f32 %v823, %v839
        %v864 = vmax.f32 %v824, %v841
        %v865 = vmax.f32 %v825, %v841
        %v866 = vmax.f32 %v826, %v843
        %v867 = vmax.f32 %v827, %v843
        %v868 = vmax.f32 %v828, %v845
        %v869 = vmax.f32 %v829, %v845
        %v870 = vmax.f32 %v830, %v847
        %v871 = vmax.f32 %v831, %v847
        %v872 = vmax.f32 %v832, %v849
        %v873 = vmax.f32 %v833, %v849
        %v874 = vmax.f32 %v834, %v851
        %v875 = vmax.f32 %v835, %v851
        %876 = vrot.lane.b32.xlu0 %v579, 98
        %v877 = vpop.permute.xlu0 %876
        %878 = vrot.lane.b32.xlu0 %v585, 98
        %v879 = vpop.permute.xlu0 %878
        %880 = vrot.lane.b32.xlu0 %v591, 98
        %v881 = vpop.permute.xlu0 %880
        %882 = vrot.lane.b32.xlu0 %v597, 98
        %v883 = vpop.permute.xlu0 %882
        %884 = vrot.lane.b32.xlu0 %v603, 98
        %v885 = vpop.permute.xlu0 %884
        %886 = vrot.lane.b32.xlu0 %v609, 98
        %v887 = vpop.permute.xlu0 %886
        %888 = vrot.lane.b32.xlu0 %v615, 98
        %v889 = vpop.permute.xlu0 %888
        %890 = vrot.lane.b32.xlu0 %v621, 98
        %v891 = vpop.permute.xlu0 %890
        %v900 = vmax.f32 %v860, %v877
        %v901 = vmax.f32 %v861, %v877
        %v902 = vmax.f32 %v862, %v879
        %v903 = vmax.f32 %v863, %v879
        %v904 = vmax.f32 %v864, %v881
        %v905 = vmax.f32 %v865, %v881
        %v906 = vmax.f32 %v866, %v883
        %v907 = vmax.f32 %v867, %v883
        %v908 = vmax.f32 %v868, %v885
        %v909 = vmax.f32 %v869, %v885
        %v910 = vmax.f32 %v870, %v887
        %v911 = vmax.f32 %v871, %v887
        %v912 = vmax.f32 %v872, %v889
        %v913 = vmax.f32 %v873, %v889
        %v914 = vmax.f32 %v874, %v891
        %v915 = vmax.f32 %v875, %v891
        %916 = vrot.lane.b32.xlu0 %v732, 120
        %v917 = vpop.permute.xlu0 %916
        %v919 = vadd.f32 %v900, %v917
        %v920 = vadd.f32 %v901, %v917
        %v921 = vadd.f32 %v902, %v917
        %v922 = vadd.f32 %v903, %v917
        %v923 = vadd.f32 %v904, %v917
        %v924 = vadd.f32 %v905, %v917
        %v925 = vadd.f32 %v906, %v917
        %v926 = vadd.f32 %v907, %v917
        %v927 = vadd.f32 %v908, %v917
        %v928 = vadd.f32 %v909, %v917
        %v929 = vadd.f32 %v910, %v917
        %v930 = vadd.f32 %v911, %v917
        %v931 = vadd.f32 %v912, %v917
        %v932 = vadd.f32 %v913, %v917
        %v933 = vadd.f32 %v914, %v917
        %v934 = vadd.f32 %v915, %v917
        %v935 = vmax.f32 %v919, 0.0
        %v936 = vmax.f32 %v920, 0.0
        %v937 = vmax.f32 %v921, 0.0
        %v938 = vmax.f32 %v922, 0.0
        %v939 = vmax.f32 %v923, 0.0
        %v940 = vmax.f32 %v924, 0.0
        %v941 = vmax.f32 %v925, 0.0
        %v942 = vmax.f32 %v926, 0.0
        %v943 = vmax.f32 %v927, 0.0
        %v944 = vmax.f32 %v928, 0.0
        %v945 = vmax.f32 %v929, 0.0
        %v946 = vmax.f32 %v930, 0.0
        %v947 = vmax.f32 %v931, 0.0
        %v948 = vmax.f32 %v932, 0.0
        %v949 = vmax.f32 %v933, 0.0
        %v950 = vmax.f32 %v934, 0.0
        %v957 = vrot.slane %v742, 1
        %v958 = vrot.slane %v743, 1
        %v959 = vsel %vm349, %v957, %v958
        %v960 = vrot.slane %v744, 1
        %v961 = vsel %vm349, %v958, %v960
        %v962 = vrot.slane %v745, 1
        %v963 = vsel %vm349, %v960, %v962
        %v964 = vrot.slane %v746, 1
        %v965 = vsel %vm349, %v962, %v964
        %v966 = vrot.slane %v747, 1
        %v967 = vsel %vm349, %v964, %v966
        %968 = vrot.lane.b32.xlu0 %v959, 10
        %v969 = vpop.permute.xlu0 %968
        %970 = vrot.lane.b32.xlu0 %v961, 10
        %v971 = vpop.permute.xlu0 %970
        %972 = vrot.lane.b32.xlu0 %v963, 10
        %v973 = vpop.permute.xlu0 %972
        %974 = vrot.lane.b32.xlu0 %v965, 10
        %v975 = vpop.permute.xlu0 %974
        %976 = vrot.lane.b32.xlu0 %v967, 10
        %v977 = vpop.permute.xlu0 %976
        %vm983 = vcmask 1045504
        %v984 = vrot.slane %v742, 2
        %v985 = vrot.slane %v743, 2
        %v986 = vsel %vm983, %v984, %v985
        %v987 = vrot.slane %v744, 2
        %v988 = vsel %vm983, %v985, %v987
        %v989 = vrot.slane %v745, 2
        %v990 = vsel %vm983, %v987, %v989
        %v991 = vrot.slane %v746, 2
        %v992 = vsel %vm983, %v989, %v991
        %v993 = vrot.slane %v747, 2
        %v994 = vsel %vm983, %v991, %v993
        %995 = vrot.lane.b32.xlu0 %v986, 20
        %v996 = vpop.permute.xlu0 %995
        %997 = vrot.lane.b32.xlu0 %v988, 20
        %v998 = vpop.permute.xlu0 %997
        %999 = vrot.lane.b32.xlu0 %v990, 20
        %v1000 = vpop.permute.xlu0 %999
        %1001 = vrot.lane.b32.xlu0 %v992, 20
        %v1002 = vpop.permute.xlu0 %1001
        %1003 = vrot.lane.b32.xlu0 %v994, 20
        %v1004 = vpop.permute.xlu0 %1003
        %1010 = vrot.lane.b32.xlu0 %v743, 30
        %v1011 = vpop.permute.xlu0 %1010
        %1012 = vrot.lane.b32.xlu0 %v744, 30
        %v1013 = vpop.permute.xlu0 %1012
        %1014 = vrot.lane.b32.xlu0 %v745, 30
        %v1015 = vpop.permute.xlu0 %1014
        %1016 = vrot.lane.b32.xlu0 %v746, 30
        %v1017 = vpop.permute.xlu0 %1016
        %1018 = vrot.lane.b32.xlu0 %v747, 30
        %v1019 = vpop.permute.xlu0 %1018
        %v1026 = vrot.slane %v748, 1
        %v1027 = vsel %vm349, %v966, %v1026
        %1028 = vrot.lane.b32.xlu0 %v961, 40
        %v1029 = vpop.permute.xlu0 %1028
        %1030 = vrot.lane.b32.xlu0 %v963, 40
        %v1031 = vpop.permute.xlu0 %1030
        %1032 = vrot.lane.b32.xlu0 %v965, 40
        %v1033 = vpop.permute.xlu0 %1032
        %1034 = vrot.lane.b32.xlu0 %v967, 40
        %v1035 = vpop.permute.xlu0 %1034
        %1036 = vrot.lane.b32.xlu0 %v1027, 40
        %v1037 = vpop.permute.xlu0 %1036
        %v1043 = vrot.slane %v748, 2
        %v1044 = vsel %vm983, %v993, %v1043
        %1045 = vrot.lane.b32.xlu0 %v988, 50
        %v1046 = vpop.permute.xlu0 %1045
        %1047 = vrot.lane.b32.xlu0 %v990, 50
        %v1048 = vpop.permute.xlu0 %1047
        %1049 = vrot.lane.b32.xlu0 %v992, 50
        %v1050 = vpop.permute.xlu0 %1049
        %1051 = vrot.lane.b32.xlu0 %v994, 50
        %v1052 = vpop.permute.xlu0 %1051
        %1053 = vrot.lane.b32.xlu0 %v1044, 50
        %v1054 = vpop.permute.xlu0 %1053
        %1060 = vrot.lane.b32.xlu0 %v744, 60
        %v1061 = vpop.permute.xlu0 %1060
        %1062 = vrot.lane.b32.xlu0 %v745, 60
        %v1063 = vpop.permute.xlu0 %1062
        %1064 = vrot.lane.b32.xlu0 %v746, 60
        %v1065 = vpop.permute.xlu0 %1064
        %1066 = vrot.lane.b32.xlu0 %v747, 60
        %v1067 = vpop.permute.xlu0 %1066
        %1068 = vrot.lane.b32.xlu0 %v748, 60
        %v1069 = vpop.permute.xlu0 %1068
        %v1076 = vrot.slane %v749, 1
        %v1077 = vsel %vm349, %v1026, %v1076
        %1078 = vrot.lane.b32.xlu0 %v963, 70
        %v1079 = vpop.permute.xlu0 %1078
        %1080 = vrot.lane.b32.xlu0 %v965, 70
        %v1081 = vpop.permute.xlu0 %1080
        %1082 = vrot.lane.b32.xlu0 %v967, 70
        %v1083 = vpop.permute.xlu0 %1082
        %1084 = vrot.lane.b32.xlu0 %v1027, 70
        %v1085 = vpop.permute.xlu0 %1084
        %1086 = vrot.lane.b32.xlu0 %v1077, 70
        %v1087 = vpop.permute.xlu0 %1086
        %v1093 = vrot.slane %v749, 2
        %v1094 = vsel %vm983, %v1043, %v1093
        %1095 = vrot.lane.b32.xlu0 %v990, 80
        %v1096 = vpop.permute.xlu0 %1095
        %1097 = vrot.lane.b32.xlu0 %v992, 80
        %v1098 = vpop.permute.xlu0 %1097
        %1099 = vrot.lane.b32.xlu0 %v994, 80
        %v1100 = vpop.permute.xlu0 %1099
        %1101 = vrot.lane.b32.xlu0 %v1044, 80
        %v1102 = vpop.permute.xlu0 %1101
        %1103 = vrot.lane.b32.xlu0 %v1094, 80
        %v1104 = vpop.permute.xlu0 %1103
        %1115 = vrot.lane.b32.xlu0 %v761, 50
        %v1116 = vpop.permute.xlu0 %1115
        %1117 = vrot.lane.b32.xlu0 %v762, 50
        %v1118 = vpop.permute.xlu0 %1117
        %1119 = vrot.lane.b32.xlu0 %v763, 50
        %v1120 = vpop.permute.xlu0 %1119
        %1121 = vrot.lane.b32.xlu0 %v764, 50
        %v1122 = vpop.permute.xlu0 %1121
        %1123 = vrot.lane.b32.xlu0 %v765, 50
        %v1124 = vpop.permute.xlu0 %1123
        %v1131 = vrot.slane %v761, 1
        %v1132 = vrot.slane %v762, 1
        %v1133 = vsel %vm349, %v1131, %v1132
        %v1134 = vrot.slane %v763, 1
        %v1135 = vsel %vm349, %v1132, %v1134
        %v1136 = vrot.slane %v764, 1
        %v1137 = vsel %vm349, %v1134, %v1136
        %v1138 = vrot.slane %v765, 1
        %v1139 = vsel %vm349, %v1136, %v1138
        %v1140 = vrot.slane %v766, 1
        %v1141 = vsel %vm349, %v1138, %v1140
        %1142 = vrot.lane.b32.xlu0 %v1133, 60
        %v1143 = vpop.permute.xlu0 %1142
        %1144 = vrot.lane.b32.xlu0 %v1135, 60
        %v1145 = vpop.permute.xlu0 %1144
        %1146 = vrot.lane.b32.xlu0 %v1137, 60
        %v1147 = vpop.permute.xlu0 %1146
        %1148 = vrot.lane.b32.xlu0 %v1139, 60
        %v1149 = vpop.permute.xlu0 %1148
        %1150 = vrot.lane.b32.xlu0 %v1141, 60
        %v1151 = vpop.permute.xlu0 %1150
        %v1157 = vrot.slane %v761, 2
        %v1158 = vrot.slane %v762, 2
        %v1159 = vsel %vm983, %v1157, %v1158
        %v1160 = vrot.slane %v763, 2
        %v1161 = vsel %vm983, %v1158, %v1160
        %v1162 = vrot.slane %v764, 2
        %v1163 = vsel %vm983, %v1160, %v1162
        %v1164 = vrot.slane %v765, 2
        %v1165 = vsel %vm983, %v1162, %v1164
        %v1166 = vrot.slane %v766, 2
        %v1167 = vsel %vm983, %v1164, %v1166
        %1168 = vrot.lane.b32.xlu0 %v1159, 70
        %v1169 = vpop.permute.xlu0 %1168
        %1170 = vrot.lane.b32.xlu0 %v1161, 70
        %v1171 = vpop.permute.xlu0 %1170
        %1172 = vrot.lane.b32.xlu0 %v1163, 70
        %v1173 = vpop.permute.xlu0 %1172
        %1174 = vrot.lane.b32.xlu0 %v1165, 70
        %v1175 = vpop.permute.xlu0 %1174
        %1176 = vrot.lane.b32.xlu0 %v1167, 70
        %v1177 = vpop.permute.xlu0 %1176
        %1183 = vrot.lane.b32.xlu0 %v762, 80
        %v1184 = vpop.permute.xlu0 %1183
        %1185 = vrot.lane.b32.xlu0 %v763, 80
        %v1186 = vpop.permute.xlu0 %1185
        %1187 = vrot.lane.b32.xlu0 %v764, 80
        %v1188 = vpop.permute.xlu0 %1187
        %1189 = vrot.lane.b32.xlu0 %v765, 80
        %v1190 = vpop.permute.xlu0 %1189
        %1191 = vrot.lane.b32.xlu0 %v766, 80
        %v1192 = vpop.permute.xlu0 %1191
        %v1199 = vrot.slane %v767, 1
        %v1200 = vsel %vm349, %v1140, %v1199
        %1201 = vrot.lane.b32.xlu0 %v1135, 90
        %v1202 = vpop.permute.xlu0 %1201
        %1203 = vrot.lane.b32.xlu0 %v1137, 90
        %v1204 = vpop.permute.xlu0 %1203
        %1205 = vrot.lane.b32.xlu0 %v1139, 90
        %v1206 = vpop.permute.xlu0 %1205
        %1207 = vrot.lane.b32.xlu0 %v1141, 90
        %v1208 = vpop.permute.xlu0 %1207
        %1209 = vrot.lane.b32.xlu0 %v1200, 90
        %v1210 = vpop.permute.xlu0 %1209
        %v1216 = vrot.slane %v767, 2
        %v1217 = vsel %vm983, %v1166, %v1216
        %1218 = vrot.lane.b32.xlu0 %v1161, 100
        %v1219 = vpop.permute.xlu0 %1218
        %1220 = vrot.lane.b32.xlu0 %v1163, 100
        %v1221 = vpop.permute.xlu0 %1220
        %1222 = vrot.lane.b32.xlu0 %v1165, 100
        %v1223 = vpop.permute.xlu0 %1222
        %1224 = vrot.lane.b32.xlu0 %v1167, 100
        %v1225 = vpop.permute.xlu0 %1224
        %1226 = vrot.lane.b32.xlu0 %v1217, 100
        %v1227 = vpop.permute.xlu0 %1226
        %1233 = vrot.lane.b32.xlu0 %v763, 110
        %v1234 = vpop.permute.xlu0 %1233
        %1235 = vrot.lane.b32.xlu0 %v764, 110
        %v1236 = vpop.permute.xlu0 %1235
        %1237 = vrot.lane.b32.xlu0 %v765, 110
        %v1238 = vpop.permute.xlu0 %1237
        %1239 = vrot.lane.b32.xlu0 %v766, 110
        %v1240 = vpop.permute.xlu0 %1239
        %1241 = vrot.lane.b32.xlu0 %v767, 110
        %v1242 = vpop.permute.xlu0 %1241
        %vm1248 = vcmask 80896
        %v1249 = vsel %vm1248, %v742, %v969
        %v1250 = vsel %vm1248, %v743, %v971
        %v1251 = vsel %vm1248, %v744, %v973
        %v1252 = vsel %vm1248, %v745, %v975
        %v1253 = vsel %vm1248, %v746, %v977
        %vm1254 = vcmask 162816
        %v1255 = vsel %vm1254, %v1249, %v996
        %v1256 = vsel %vm1254, %v1250, %v998
        %v1257 = vsel %vm1254, %v1251, %v1000
        %v1258 = vsel %vm1254, %v1252, %v1002
        %v1259 = vsel %vm1254, %v1253, %v1004
        %vm1260 = vcmask 244736
        %v1261 = vsel %vm1260, %v1255, %v1011
        %v1262 = vsel %vm1260, %v1256, %v1013
        %v1263 = vsel %vm1260, %v1257, %v1015
        %v1264 = vsel %vm1260, %v1258, %v1017
        %v1265 = vsel %vm1260, %v1259, %v1019
        %vm1266 = vcmask 326656
        %v1267 = vsel %vm1266, %v1261, %v1029
        %v1268 = vsel %vm1266, %v1262, %v1031
        %v1269 = vsel %vm1266, %v1263, %v1033
        %v1270 = vsel %vm1266, %v1264, %v1035
        %v1271 = vsel %vm1266, %v1265, %v1037
        %vm1272 = vcmask 408576
        %v1273 = vsel %vm1272, %v1267, %v1046
        %v1274 = vsel %vm1272, %v1268, %v1048
        %v1275 = vsel %vm1272, %v1269, %v1050
        %v1276 = vsel %vm1272, %v1270, %v1052
        %v1277 = vsel %vm1272, %v1271, %v1054
        %vm1278 = vcmask 490496
        %v1279 = vsel %vm1278, %v1273, %v1061
        %v1280 = vsel %vm1278, %v1274, %v1063
        %v1281 = vsel %vm1278, %v1275, %v1065
        %v1282 = vsel %vm1278, %v1276, %v1067
        %v1283 = vsel %vm1278, %v1277, %v1069
        %vm1284 = vcmask 572416
        %v1285 = vsel %vm1284, %v1279, %v1079
        %v1286 = vsel %vm1284, %v1280, %v1081
        %v1287 = vsel %vm1284, %v1281, %v1083
        %v1288 = vsel %vm1284, %v1282, %v1085
        %v1289 = vsel %vm1284, %v1283, %v1087
        %vm1290 = vcmask 654336
        %v1291 = vsel %vm1290, %v1285, %v1096
        %v1292 = vsel %vm1290, %v1286, %v1098
        %v1293 = vsel %vm1290, %v1287, %v1100
        %v1294 = vsel %vm1290, %v1288, %v1102
        %v1295 = vsel %vm1290, %v1289, %v1104
        %vm1296 = vcmask 736256
        %v1297 = vsel %vm1296, %v1291, %v1116
        %v1298 = vsel %vm1296, %v1292, %v1118
        %v1299 = vsel %vm1296, %v1293, %v1120
        %v1300 = vsel %vm1296, %v1294, %v1122
        %v1301 = vsel %vm1296, %v1295, %v1124
        %vm1302 = vcmask 818176
        %v1303 = vsel %vm1302, %v1297, %v1143
        %v1304 = vsel %vm1302, %v1298, %v1145
        %v1305 = vsel %vm1302, %v1299, %v1147
        %v1306 = vsel %vm1302, %v1300, %v1149
        %v1307 = vsel %vm1302, %v1301, %v1151
        %vm1308 = vcmask 900096
        %v1309 = vsel %vm1308, %v1303, %v1169
        %v1310 = vsel %vm1308, %v1304, %v1171
        %v1311 = vsel %vm1308, %v1305, %v1173
        %v1312 = vsel %vm1308, %v1306, %v1175
        %v1313 = vsel %vm1308, %v1307, %v1177
        %vm1314 = vcmask 982016
        %v1315 = vsel %vm1314, %v1309, %v1184
        %v1316 = vsel %vm1314, %v1310, %v1186
        %v1317 = vsel %vm1314, %v1311, %v1188
        %v1318 = vsel %vm1314, %v1312, %v1190
        %v1319 = vsel %vm1314, %v1313, %v1192
        %vm1320 = vcmask 15360
        %v1321 = vsel %vm1320, %v1184, %v1202
        %v1322 = vsel %vm1320, %v1186, %v1204
        %v1323 = vsel %vm1320, %v1188, %v1206
        %v1324 = vsel %vm1320, %v1190, %v1208
        %v1325 = vsel %vm1320, %v1192, %v1210
        %vm1326 = vcmask 97280
        %v1327 = vsel %vm1326, %v1321, %v1219
        %v1328 = vsel %vm1326, %v1322, %v1221
        %v1329 = vsel %vm1326, %v1323, %v1223
        %v1330 = vsel %vm1326, %v1324, %v1225
        %v1331 = vsel %vm1326, %v1325, %v1227
        %vm1332 = vcmask 179200
        %v1333 = vsel %vm1332, %v1327, %v1234
        %v1334 = vsel %vm1332, %v1328, %v1236
        %v1335 = vsel %vm1332, %v1329, %v1238
        %v1336 = vsel %vm1332, %v1330, %v1240
        %v1337 = vsel %vm1332, %v1331, %v1242
        %1339 = vrot.lane.b32.xlu0 %v763, 88
        %v1340 = vpop.permute.xlu0 %1339
        %1341 = vrot.lane.b32.xlu0 %v764, 88
        %v1342 = vpop.permute.xlu0 %1341
        %1343 = vrot.lane.b32.xlu0 %v765, 88
        %v1344 = vpop.permute.xlu0 %1343
        %1345 = vrot.lane.b32.xlu0 %v766, 88
        %v1346 = vpop.permute.xlu0 %1345
        %1347 = vrot.lane.b32.xlu0 %v767, 88
        %v1348 = vpop.permute.xlu0 %1347
        %1349 = vrot.lane.b32.xlu0 %v768, 88
        %v1350 = vpop.permute.xlu0 %1349
        %v1357 = vrot.slane %v768, 1
        %v1358 = vsel %vm349, %v1199, %v1357
        %1359 = vrot.lane.b32.xlu0 %v1137, 98
        %v1360 = vpop.permute.xlu0 %1359
        %1361 = vrot.lane.b32.xlu0 %v1139, 98
        %v1362 = vpop.permute.xlu0 %1361
        %1363 = vrot.lane.b32.xlu0 %v1141, 98
        %v1364 = vpop.permute.xlu0 %1363
        %1365 = vrot.lane.b32.xlu0 %v1200, 98
        %v1366 = vpop.permute.xlu0 %1365
        %1367 = vrot.lane.b32.xlu0 %v1358, 98
        %v1368 = vpop.permute.xlu0 %1367
        %1369 = vrot.lane.b32.xlu0 %v1357, 98
        %v1370 = vpop.permute.xlu0 %1369
        %vm1382 = vcmask 1040384
        %v1383 = vrot.slane %v780, 7
        %v1384 = vrot.slane %v781, 7
        %v1385 = vsel %vm1382, %v1383, %v1384
        %v1386 = vrot.slane %v782, 7
        %v1387 = vsel %vm1382, %v1384, %v1386
        %v1388 = vrot.slane %v783, 7
        %v1389 = vsel %vm1382, %v1386, %v1388
        %v1390 = vrot.slane %v784, 7
        %v1391 = vsel %vm1382, %v1388, %v1390
        %1392 = vrot.lane.b32.xlu0 %v1383, 68
        %v1393 = vpop.permute.xlu0 %1392
        %1394 = vrot.lane.b32.xlu0 %v1385, 68
        %v1395 = vpop.permute.xlu0 %1394
        %1396 = vrot.lane.b32.xlu0 %v1387, 68
        %v1397 = vpop.permute.xlu0 %1396
        %1398 = vrot.lane.b32.xlu0 %v1389, 68
        %v1399 = vpop.permute.xlu0 %1398
        %1400 = vrot.lane.b32.xlu0 %v1391, 68
        %v1401 = vpop.permute.xlu0 %1400
        %1402 = vrot.lane.b32.xlu0 %v1390, 68
        %v1403 = vpop.permute.xlu0 %1402
        %1411 = vrot.lane.b32.xlu0 %v780, 78
        %v1412 = vpop.permute.xlu0 %1411
        %1413 = vrot.lane.b32.xlu0 %v781, 78
        %v1414 = vpop.permute.xlu0 %1413
        %1415 = vrot.lane.b32.xlu0 %v782, 78
        %v1416 = vpop.permute.xlu0 %1415
        %1417 = vrot.lane.b32.xlu0 %v783, 78
        %v1418 = vpop.permute.xlu0 %1417
        %1419 = vrot.lane.b32.xlu0 %v784, 78
        %v1420 = vpop.permute.xlu0 %1419
        %1421 = vrot.lane.b32.xlu0 %v785, 78
        %v1422 = vpop.permute.xlu0 %1421
        %v1429 = vrot.slane %v780, 1
        %v1430 = vrot.slane %v781, 1
        %v1431 = vsel %vm349, %v1429, %v1430
        %v1432 = vrot.slane %v782, 1
        %v1433 = vsel %vm349, %v1430, %v1432
        %v1434 = vrot.slane %v783, 1
        %v1435 = vsel %vm349, %v1432, %v1434
        %v1436 = vrot.slane %v784, 1
        %v1437 = vsel %vm349, %v1434, %v1436
        %v1438 = vrot.slane %v785, 1
        %v1439 = vsel %vm349, %v1436, %v1438
        %1440 = vrot.lane.b32.xlu0 %v1431, 88
        %v1441 = vpop.permute.xlu0 %1440
        %1442 = vrot.lane.b32.xlu0 %v1433, 88
        %v1443 = vpop.permute.xlu0 %1442
        %1444 = vrot.lane.b32.xlu0 %v1435, 88
        %v1445 = vpop.permute.xlu0 %1444
        %1446 = vrot.lane.b32.xlu0 %v1437, 88
        %v1447 = vpop.permute.xlu0 %1446
        %1448 = vrot.lane.b32.xlu0 %v1439, 88
        %v1449 = vpop.permute.xlu0 %1448
        %1450 = vrot.lane.b32.xlu0 %v1438, 88
        %v1451 = vpop.permute.xlu0 %1450
        %v1458 = vrot.slane %v785, 7
        %v1459 = vsel %vm1382, %v1390, %v1458
        %1460 = vrot.lane.b32.xlu0 %v1384, 98
        %v1461 = vpop.permute.xlu0 %1460
        %1462 = vrot.lane.b32.xlu0 %v1387, 98
        %v1463 = vpop.permute.xlu0 %1462
        %1464 = vrot.lane.b32.xlu0 %v1389, 98
        %v1465 = vpop.permute.xlu0 %1464
        %1466 = vrot.lane.b32.xlu0 %v1391, 98
        %v1467 = vpop.permute.xlu0 %1466
        %1468 = vrot.lane.b32.xlu0 %v1459, 98
        %v1469 = vpop.permute.xlu0 %1468
        %1470 = vrot.lane.b32.xlu0 %v1458, 98
        %v1471 = vpop.permute.xlu0 %1470
        %1479 = vrot.lane.b32.xlu0 %v781, 108
        %v1480 = vpop.permute.xlu0 %1479
        %1481 = vrot.lane.b32.xlu0 %v782, 108
        %v1482 = vpop.permute.xlu0 %1481
        %1483 = vrot.lane.b32.xlu0 %v783, 108
        %v1484 = vpop.permute.xlu0 %1483
        %1485 = vrot.lane.b32.xlu0 %v784, 108
        %v1486 = vpop.permute.xlu0 %1485
        %1487 = vrot.lane.b32.xlu0 %v785, 108
        %v1488 = vpop.permute.xlu0 %1487
        %1489 = vrot.lane.b32.xlu0 %v786, 108
        %v1490 = vpop.permute.xlu0 %1489
        %v1497 = vrot.slane %v786, 1
        %v1498 = vsel %vm349, %v1438, %v1497
        %1499 = vrot.lane.b32.xlu0 %v1433, 118
        %v1500 = vpop.permute.xlu0 %1499
        %1501 = vrot.lane.b32.xlu0 %v1435, 118
        %v1502 = vpop.permute.xlu0 %1501
        %1503 = vrot.lane.b32.xlu0 %v1437, 118
        %v1504 = vpop.permute.xlu0 %1503
        %1505 = vrot.lane.b32.xlu0 %v1439, 118
        %v1506 = vpop.permute.xlu0 %1505
        %1507 = vrot.lane.b32.xlu0 %v1498, 118
        %v1508 = vpop.permute.xlu0 %1507
        %1509 = vrot.lane.b32.xlu0 %v1497, 118
        %v1510 = vpop.permute.xlu0 %1509
        %v1517 = vrot.slane %v786, 7
        %v1518 = vsel %vm1382, %v1458, %v1517
        %1526 = vrot.lane.b32.xlu0 %v782, 10
        %v1527 = vpop.permute.xlu0 %1526
        %1528 = vrot.lane.b32.xlu0 %v783, 10
        %v1529 = vpop.permute.xlu0 %1528
        %1530 = vrot.lane.b32.xlu0 %v784, 10
        %v1531 = vpop.permute.xlu0 %1530
        %1532 = vrot.lane.b32.xlu0 %v785, 10
        %v1533 = vpop.permute.xlu0 %1532
        %1534 = vrot.lane.b32.xlu0 %v786, 10
        %v1535 = vpop.permute.xlu0 %1534
        %1536 = vrot.lane.b32.xlu0 %v787, 10
        %v1537 = vpop.permute.xlu0 %1536
        %v1544 = vrot.slane %v787, 1
        %v1545 = vsel %vm349, %v1497, %v1544
        %1546 = vrot.lane.b32.xlu0 %v1435, 20
        %v1547 = vpop.permute.xlu0 %1546
        %1548 = vrot.lane.b32.xlu0 %v1437, 20
        %v1549 = vpop.permute.xlu0 %1548
        %1550 = vrot.lane.b32.xlu0 %v1439, 20
        %v1551 = vpop.permute.xlu0 %1550
        %1552 = vrot.lane.b32.xlu0 %v1498, 20
        %v1553 = vpop.permute.xlu0 %1552
        %1554 = vrot.lane.b32.xlu0 %v1545, 20
        %v1555 = vpop.permute.xlu0 %1554
        %1556 = vrot.lane.b32.xlu0 %v1544, 20
        %v1557 = vpop.permute.xlu0 %1556
        %v1574 = vrot.slane %v935, 7
        %v1575 = vrot.slane %v936, 7
        %v1576 = vrot.slane %v937, 7
        %v1577 = vsel %vm1382, %v1574, %v1576
        %v1578 = vrot.slane %v938, 7
        %v1579 = vsel %vm1382, %v1575, %v1578
        %v1580 = vrot.slane %v939, 7
        %v1581 = vsel %vm1382, %v1576, %v1580
        %v1582 = vrot.slane %v940, 7
        %v1583 = vsel %vm1382, %v1578, %v1582
        %v1584 = vrot.slane %v941, 7
        %v1585 = vsel %vm1382, %v1580, %v1584
        %v1586 = vrot.slane %v942, 7
        %v1587 = vsel %vm1382, %v1582, %v1586
        %v1588 = vrot.slane %v943, 7
        %v1589 = vsel %vm1382, %v1584, %v1588
        %v1590 = vrot.slane %v944, 7
        %v1591 = vsel %vm1382, %v1586, %v1590
        %1592 = vrot.lane.b32.xlu0 %v1574, 118
        %v1593 = vpop.permute.xlu0 %1592
        %1594 = vrot.lane.b32.xlu0 %v1575, 118
        %v1595 = vpop.permute.xlu0 %1594
        %1596 = vrot.lane.b32.xlu0 %v1577, 118
        %v1597 = vpop.permute.xlu0 %1596
        %1598 = vrot.lane.b32.xlu0 %v1579, 118
        %v1599 = vpop.permute.xlu0 %1598
        %1600 = vrot.lane.b32.xlu0 %v1581, 118
        %v1601 = vpop.permute.xlu0 %1600
        %1602 = vrot.lane.b32.xlu0 %v1583, 118
        %v1603 = vpop.permute.xlu0 %1602
        %1604 = vrot.lane.b32.xlu0 %v1585, 118
        %v1605 = vpop.permute.xlu0 %1604
        %1606 = vrot.lane.b32.xlu0 %v1587, 118
        %v1607 = vpop.permute.xlu0 %1606
        %1608 = vrot.lane.b32.xlu0 %v1589, 118
        %v1609 = vpop.permute.xlu0 %1608
        %1610 = vrot.lane.b32.xlu0 %v1591, 118
        %v1611 = vpop.permute.xlu0 %1610
        %1612 = vrot.lane.b32.xlu0 %v1588, 118
        %v1613 = vpop.permute.xlu0 %1612
        %1614 = vrot.lane.b32.xlu0 %v1590, 118
        %v1615 = vpop.permute.xlu0 %1614
        %vm1616 = vcmask 965632
        %v1617 = vsel %vm1616, %v1593, %v1595
        %v1618 = vsel %vm1616, %v1597, %v1599
        %v1619 = vsel %vm1616, %v1601, %v1603
        %v1620 = vsel %vm1616, %v1605, %v1607
        %v1621 = vsel %vm1616, %v1609, %v1611
        %v1622 = vsel %vm1616, %v1613, %v1615
        %v1631 = vrot.slane %v935, 1
        %v1632 = vrot.slane %v937, 1
        %v1633 = vsel %vm349, %v1631, %v1632
        %v1634 = vrot.slane %v936, 1
        %v1635 = vrot.slane %v938, 1
        %v1636 = vsel %vm349, %v1634, %v1635
        %v1637 = vrot.slane %v939, 1
        %v1638 = vsel %vm349, %v1632, %v1637
        %v1639 = vrot.slane %v940, 1
        %v1640 = vsel %vm349, %v1635, %v1639
        %v1641 = vrot.slane %v941, 1
        %v1642 = vsel %vm349, %v1637, %v1641
        %v1643 = vrot.slane %v942, 1
        %v1644 = vsel %vm349, %v1639, %v1643
        %v1645 = vrot.slane %v943, 1
        %v1646 = vsel %vm349, %v1641, %v1645
        %v1647 = vrot.slane %v944, 1
        %v1648 = vsel %vm349, %v1643, %v1647
        %v1649 = vrot.slane %v945, 1
        %v1650 = vsel %vm349, %v1645, %v1649
        %v1651 = vrot.slane %v946, 1
        %v1652 = vsel %vm349, %v1647, %v1651
        %1653 = vrot.lane.b32.xlu0 %v1633, 10
        %v1654 = vpop.permute.xlu0 %1653
        %1655 = vrot.lane.b32.xlu0 %v1636, 10
        %v1656 = vpop.permute.xlu0 %1655
        %1657 = vrot.lane.b32.xlu0 %v1638, 10
        %v1658 = vpop.permute.xlu0 %1657
        %1659 = vrot.lane.b32.xlu0 %v1640, 10
        %v1660 = vpop.permute.xlu0 %1659
        %1661 = vrot.lane.b32.xlu0 %v1642, 10
        %v1662 = vpop.permute.xlu0 %1661
        %1663 = vrot.lane.b32.xlu0 %v1644, 10
        %v1664 = vpop.permute.xlu0 %1663
        %1665 = vrot.lane.b32.xlu0 %v1646, 10
        %v1666 = vpop.permute.xlu0 %1665
        %1667 = vrot.lane.b32.xlu0 %v1648, 10
        %v1668 = vpop.permute.xlu0 %1667
        %1669 = vrot.lane.b32.xlu0 %v1650, 10
        %v1670 = vpop.permute.xlu0 %1669
        %1671 = vrot.lane.b32.xlu0 %v1652, 10
        %v1672 = vpop.permute.xlu0 %1671
        %1673 = vrot.lane.b32.xlu0 %v1649, 10
        %v1674 = vpop.permute.xlu0 %1673
        %1675 = vrot.lane.b32.xlu0 %v1651, 10
        %v1676 = vpop.permute.xlu0 %1675
        %v1677 = vsel %vm1248, %v1654, %v1656
        %v1678 = vsel %vm1248, %v1658, %v1660
        %v1679 = vsel %vm1248, %v1662, %v1664
        %v1680 = vsel %vm1248, %v1666, %v1668
        %v1681 = vsel %vm1248, %v1670, %v1672
        %v1682 = vsel %vm1248, %v1674, %v1676
        %v1689 = vrot.slane %v945, 7
        %v1690 = vsel %vm1382, %v1588, %v1689
        %v1691 = vrot.slane %v946, 7
        %v1692 = vsel %vm1382, %v1590, %v1691
        %1693 = vrot.lane.b32.xlu0 %v1576, 20
        %v1694 = vpop.permute.xlu0 %1693
        %1695 = vrot.lane.b32.xlu0 %v1578, 20
        %v1696 = vpop.permute.xlu0 %1695
        %1697 = vrot.lane.b32.xlu0 %v1581, 20
        %v1698 = vpop.permute.xlu0 %1697
        %1699 = vrot.lane.b32.xlu0 %v1583, 20
        %v1700 = vpop.permute.xlu0 %1699
        %1701 = vrot.lane.b32.xlu0 %v1585, 20
        %v1702 = vpop.permute.xlu0 %1701
        %1703 = vrot.lane.b32.xlu0 %v1587, 20
        %v1704 = vpop.permute.xlu0 %1703
        %1705 = vrot.lane.b32.xlu0 %v1589, 20
        %v1706 = vpop.permute.xlu0 %1705
        %1707 = vrot.lane.b32.xlu0 %v1591, 20
        %v1708 = vpop.permute.xlu0 %1707
        %1709 = vrot.lane.b32.xlu0 %v1690, 20
        %v1710 = vpop.permute.xlu0 %1709
        %1711 = vrot.lane.b32.xlu0 %v1692, 20
        %v1712 = vpop.permute.xlu0 %1711
        %1713 = vrot.lane.b32.xlu0 %v1689, 20
        %v1714 = vpop.permute.xlu0 %1713
        %1715 = vrot.lane.b32.xlu0 %v1691, 20
        %v1716 = vpop.permute.xlu0 %1715
        %v1717 = vsel %vm1254, %v1694, %v1696
        %v1718 = vsel %vm1254, %v1698, %v1700
        %v1719 = vsel %vm1254, %v1702, %v1704
        %v1720 = vsel %vm1254, %v1706, %v1708
        %v1721 = vsel %vm1254, %v1710, %v1712
        %v1722 = vsel %vm1254, %v1714, %v1716
        %1731 = vrot.lane.b32.xlu0 %v937, 30
        %v1732 = vpop.permute.xlu0 %1731
        %1733 = vrot.lane.b32.xlu0 %v938, 30
        %v1734 = vpop.permute.xlu0 %1733
        %1735 = vrot.lane.b32.xlu0 %v939, 30
        %v1736 = vpop.permute.xlu0 %1735
        %1737 = vrot.lane.b32.xlu0 %v940, 30
        %v1738 = vpop.permute.xlu0 %1737
        %1739 = vrot.lane.b32.xlu0 %v941, 30
        %v1740 = vpop.permute.xlu0 %1739
        %1741 = vrot.lane.b32.xlu0 %v942, 30
        %v1742 = vpop.permute.xlu0 %1741
        %1743 = vrot.lane.b32.xlu0 %v943, 30
        %v1744 = vpop.permute.xlu0 %1743
        %1745 = vrot.lane.b32.xlu0 %v944, 30
        %v1746 = vpop.permute.xlu0 %1745
        %1747 = vrot.lane.b32.xlu0 %v945, 30
        %v1748 = vpop.permute.xlu0 %1747
        %1749 = vrot.lane.b32.xlu0 %v946, 30
        %v1750 = vpop.permute.xlu0 %1749
        %1751 = vrot.lane.b32.xlu0 %v947, 30
        %v1752 = vpop.permute.xlu0 %1751
        %1753 = vrot.lane.b32.xlu0 %v948, 30
        %v1754 = vpop.permute.xlu0 %1753
        %v1755 = vsel %vm1260, %v1732, %v1734
        %v1756 = vsel %vm1260, %v1736, %v1738
        %v1757 = vsel %vm1260, %v1740, %v1742
        %v1758 = vsel %vm1260, %v1744, %v1746
        %v1759 = vsel %vm1260, %v1748, %v1750
        %v1760 = vsel %vm1260, %v1752, %v1754
        %v1767 = vsel %vm1248, %v1340, %v1360
        %v1768 = vsel %vm1248, %v1342, %v1362
        %v1769 = vsel %vm1248, %v1344, %v1364
        %v1770 = vsel %vm1248, %v1346, %v1366
        %v1771 = vsel %vm1248, %v1348, %v1368
        %v1772 = vsel %vm1248, %v1350, %v1370
        %v1773 = vsel %vm1254, %v1767, %v1393
        %v1774 = vsel %vm1254, %v1768, %v1395
        %v1775 = vsel %vm1254, %v1769, %v1397
        %v1776 = vsel %vm1254, %v1770, %v1399
        %v1777 = vsel %vm1254, %v1771, %v1401
        %v1778 = vsel %vm1254, %v1772, %v1403
        %v1779 = vsel %vm1260, %v1773, %v1412
        %v1780 = vsel %vm1260, %v1774, %v1414
        %v1781 = vsel %vm1260, %v1775, %v1416
        %v1782 = vsel %vm1260, %v1776, %v1418
        %v1783 = vsel %vm1260, %v1777, %v1420
        %v1784 = vsel %vm1260, %v1778, %v1422
        %v1785 = vsel %vm1266, %v1779, %v1441
        %v1786 = vsel %vm1266, %v1780, %v1443
        %v1787 = vsel %vm1266, %v1781, %v1445
        %v1788 = vsel %vm1266, %v1782, %v1447
        %v1789 = vsel %vm1266, %v1783, %v1449
        %v1790 = vsel %vm1266, %v1784, %v1451
        %v1791 = vsel %vm1272, %v1785, %v1461
        %v1792 = vsel %vm1272, %v1786, %v1463
        %v1793 = vsel %vm1272, %v1787, %v1465
        %v1794 = vsel %vm1272, %v1788, %v1467
        %v1795 = vsel %vm1272, %v1789, %v1469
        %v1796 = vsel %vm1272, %v1790, %v1471
        %v1797 = vsel %vm1278, %v1791, %v1480
        %v1798 = vsel %vm1278, %v1792, %v1482
        %v1799 = vsel %vm1278, %v1793, %v1484
        %v1800 = vsel %vm1278, %v1794, %v1486
        %v1801 = vsel %vm1278, %v1795, %v1488
        %v1802 = vsel %vm1278, %v1796, %v1490
        %v1803 = vsel %vm1284, %v1797, %v1500
        %v1804 = vsel %vm1284, %v1798, %v1502
        %v1805 = vsel %vm1284, %v1799, %v1504
        %v1806 = vsel %vm1284, %v1800, %v1506
        %v1807 = vsel %vm1284, %v1801, %v1508
        %v1808 = vsel %vm1284, %v1802, %v1510
        %v1809 = vsel %vm1290, %v1803, %v1386
        %v1810 = vsel %vm1290, %v1804, %v1389
        %v1811 = vsel %vm1290, %v1805, %v1391
        %v1812 = vsel %vm1290, %v1806, %v1459
        %v1813 = vsel %vm1290, %v1807, %v1518
        %v1814 = vsel %vm1290, %v1808, %v1517
        %v1815 = vsel %vm1296, %v1809, %v1527
        %v1816 = vsel %vm1296, %v1810, %v1529
        %v1817 = vsel %vm1296, %v1811, %v1531
        %v1818 = vsel %vm1296, %v1812, %v1533
        %v1819 = vsel %vm1296, %v1813, %v1535
        %v1820 = vsel %vm1296, %v1814, %v1537
        %v1821 = vsel %vm1302, %v1815, %v1547
        %v1822 = vsel %vm1302, %v1816, %v1549
        %v1823 = vsel %vm1302, %v1817, %v1551
        %v1824 = vsel %vm1302, %v1818, %v1553
        %v1825 = vsel %vm1302, %v1819, %v1555
        %v1826 = vsel %vm1302, %v1820, %v1557
        %v1827 = vsel %vm1308, %v1821, %v1617
        %v1828 = vsel %vm1308, %v1822, %v1618
        %v1829 = vsel %vm1308, %v1823, %v1619
        %v1830 = vsel %vm1308, %v1824, %v1620
        %v1831 = vsel %vm1308, %v1825, %v1621
        %v1832 = vsel %vm1308, %v1826, %v1622
        %v1833 = vsel %vm1314, %v1827, %v935
        %v1834 = vsel %vm1314, %v1828, %v937
        %v1835 = vsel %vm1314, %v1829, %v939
        %v1836 = vsel %vm1314, %v1830, %v941
        %v1837 = vsel %vm1314, %v1831, %v943
        %v1838 = vsel %vm1314, %v1832, %v945
        %v1839 = vsel %vm1320, %v936, %v1677
        %v1840 = vsel %vm1320, %v938, %v1678
        %v1841 = vsel %vm1320, %v940, %v1679
        %v1842 = vsel %vm1320, %v942, %v1680
        %v1843 = vsel %vm1320, %v944, %v1681
        %v1844 = vsel %vm1320, %v946, %v1682
        %v1845 = vsel %vm1326, %v1839, %v1717
        %v1846 = vsel %vm1326, %v1840, %v1718
        %v1847 = vsel %vm1326, %v1841, %v1719
        %v1848 = vsel %vm1326, %v1842, %v1720
        %v1849 = vsel %vm1326, %v1843, %v1721
        %v1850 = vsel %vm1326, %v1844, %v1722
        %v1851 = vsel %vm1332, %v1845, %v1755
        %v1852 = vsel %vm1332, %v1846, %v1756
        %v1853 = vsel %vm1332, %v1847, %v1757
        %v1854 = vsel %vm1332, %v1848, %v1758
        %v1855 = vsel %vm1332, %v1849, %v1759
        %v1856 = vsel %vm1332, %v1850, %v1760
        %1857 = vrot.lane.b32.xlu0 %v937, 8
        %v1858 = vpop.permute.xlu0 %1857
        %1859 = vrot.lane.b32.xlu0 %v938, 8
        %v1860 = vpop.permute.xlu0 %1859
        %1861 = vrot.lane.b32.xlu0 %v939, 8
        %v1862 = vpop.permute.xlu0 %1861
        %1863 = vrot.lane.b32.xlu0 %v940, 8
        %v1864 = vpop.permute.xlu0 %1863
        %1865 = vrot.lane.b32.xlu0 %v941, 8
        %v1866 = vpop.permute.xlu0 %1865
        %1867 = vrot.lane.b32.xlu0 %v942, 8
        %v1868 = vpop.permute.xlu0 %1867
        %1869 = vrot.lane.b32.xlu0 %v943, 8
        %v1870 = vpop.permute.xlu0 %1869
        %1871 = vrot.lane.b32.xlu0 %v944, 8
        %v1872 = vpop.permute.xlu0 %1871
        %1873 = vrot.lane.b32.xlu0 %v945, 8
        %v1874 = vpop.permute.xlu0 %1873
        %1875 = vrot.lane.b32.xlu0 %v946, 8
        %v1876 = vpop.permute.xlu0 %1875
        %1877 = vrot.lane.b32.xlu0 %v947, 8
        %v1878 = vpop.permute.xlu0 %1877
        %1879 = vrot.lane.b32.xlu0 %v948, 8
        %v1880 = vpop.permute.xlu0 %1879
        %vm1881 = vcmask 64512
        %v1882 = vsel %vm1881, %v1858, %v1860
        %v1883 = vsel %vm1881, %v1862, %v1864
        %v1884 = vsel %vm1881, %v1866, %v1868
        %v1885 = vsel %vm1881, %v1870, %v1872
        %v1886 = vsel %vm1881, %v1874, %v1876
        %v1887 = vsel %vm1881, %v1878, %v1880
        %vm1894 = vcmask 1041408
        %v1895 = vrot.slane %v939, 6
        %v1896 = vrot.slane %v940, 6
        %v1897 = vrot.slane %v941, 6
        %v1898 = vsel %vm1894, %v1895, %v1897
        %v1899 = vrot.slane %v942, 6
        %v1900 = vsel %vm1894, %v1896, %v1899
        %v1901 = vrot.slane %v943, 6
        %v1902 = vsel %vm1894, %v1897, %v1901
        %v1903 = vrot.slane %v944, 6
        %v1904 = vsel %vm1894, %v1899, %v1903
        %v1905 = vrot.slane %v945, 6
        %v1906 = vsel %vm1894, %v1901, %v1905
        %v1907 = vrot.slane %v946, 6
        %v1908 = vsel %vm1894, %v1903, %v1907
        %v1909 = vrot.slane %v947, 6
        %v1910 = vsel %vm1894, %v1905, %v1909
        %v1911 = vrot.slane %v948, 6
        %v1912 = vsel %vm1894, %v1907, %v1911
        %1913 = vrot.lane.b32.xlu0 %v1895, 18
        %v1914 = vpop.permute.xlu0 %1913
        %1915 = vrot.lane.b32.xlu0 %v1896, 18
        %v1916 = vpop.permute.xlu0 %1915
        %1917 = vrot.lane.b32.xlu0 %v1898, 18
        %v1918 = vpop.permute.xlu0 %1917
        %1919 = vrot.lane.b32.xlu0 %v1900, 18
        %v1920 = vpop.permute.xlu0 %1919
        %1921 = vrot.lane.b32.xlu0 %v1902, 18
        %v1922 = vpop.permute.xlu0 %1921
        %1923 = vrot.lane.b32.xlu0 %v1904, 18
        %v1924 = vpop.permute.xlu0 %1923
        %1925 = vrot.lane.b32.xlu0 %v1906, 18
        %v1926 = vpop.permute.xlu0 %1925
        %1927 = vrot.lane.b32.xlu0 %v1908, 18
        %v1928 = vpop.permute.xlu0 %1927
        %1929 = vrot.lane.b32.xlu0 %v1910, 18
        %v1930 = vpop.permute.xlu0 %1929
        %1931 = vrot.lane.b32.xlu0 %v1912, 18
        %v1932 = vpop.permute.xlu0 %1931
        %1933 = vrot.lane.b32.xlu0 %v1909, 18
        %v1934 = vpop.permute.xlu0 %1933
        %1935 = vrot.lane.b32.xlu0 %v1911, 18
        %v1936 = vpop.permute.xlu0 %1935
        %vm1937 = vcmask 146432
        %v1938 = vsel %vm1937, %v1914, %v1916
        %v1939 = vsel %vm1937, %v1918, %v1920
        %v1940 = vsel %vm1937, %v1922, %v1924
        %v1941 = vsel %vm1937, %v1926, %v1928
        %v1942 = vsel %vm1937, %v1930, %v1932
        %v1943 = vsel %vm1937, %v1934, %v1936
        %v1952 = vrot.slane %v947, 7
        %v1953 = vsel %vm1382, %v1689, %v1952
        %v1954 = vrot.slane %v948, 7
        %v1955 = vsel %vm1382, %v1691, %v1954
        %v1956 = vrot.slane %v949, 7
        %v1957 = vsel %vm1382, %v1952, %v1956
        %v1958 = vrot.slane %v950, 7
        %v1959 = vsel %vm1382, %v1954, %v1958
        %1960 = vrot.lane.b32.xlu0 %v1580, 28
        %v1961 = vpop.permute.xlu0 %1960
        %1962 = vrot.lane.b32.xlu0 %v1582, 28
        %v1963 = vpop.permute.xlu0 %1962
        %1964 = vrot.lane.b32.xlu0 %v1585, 28
        %v1965 = vpop.permute.xlu0 %1964
        %1966 = vrot.lane.b32.xlu0 %v1587, 28
        %v1967 = vpop.permute.xlu0 %1966
        %1968 = vrot.lane.b32.xlu0 %v1589, 28
        %v1969 = vpop.permute.xlu0 %1968
        %1970 = vrot.lane.b32.xlu0 %v1591, 28
        %v1971 = vpop.permute.xlu0 %1970
        %1972 = vrot.lane.b32.xlu0 %v1690, 28
        %v1973 = vpop.permute.xlu0 %1972
        %1974 = vrot.lane.b32.xlu0 %v1692, 28
        %v1975 = vpop.permute.xlu0 %1974
        %1976 = vrot.lane.b32.xlu0 %v1953, 28
        %v1977 = vpop.permute.xlu0 %1976
        %1978 = vrot.lane.b32.xlu0 %v1955, 28
        %v1979 = vpop.permute.xlu0 %1978
        %1980 = vrot.lane.b32.xlu0 %v1957, 28
        %v1981 = vpop.permute.xlu0 %1980
        %1982 = vrot.lane.b32.xlu0 %v1959, 28
        %v1983 = vpop.permute.xlu0 %1982
        %vm1984 = vcmask 228352
        %v1985 = vsel %vm1984, %v1961, %v1963
        %v1986 = vsel %vm1984, %v1965, %v1967
        %v1987 = vsel %vm1984, %v1969, %v1971
        %v1988 = vsel %vm1984, %v1973, %v1975
        %v1989 = vsel %vm1984, %v1977, %v1979
        %v1990 = vsel %vm1984, %v1981, %v1983
        %1997 = vrot.lane.b32.xlu0 %v939, 38
        %v1998 = vpop.permute.xlu0 %1997
        %1999 = vrot.lane.b32.xlu0 %v940, 38
        %v2000 = vpop.permute.xlu0 %1999
        %2001 = vrot.lane.b32.xlu0 %v941, 38
        %v2002 = vpop.permute.xlu0 %2001
        %2003 = vrot.lane.b32.xlu0 %v942, 38
        %v2004 = vpop.permute.xlu0 %2003
        %2005 = vrot.lane.b32.xlu0 %v943, 38
        %v2006 = vpop.permute.xlu0 %2005
        %2007 = vrot.lane.b32.xlu0 %v944, 38
        %v2008 = vpop.permute.xlu0 %2007
        %2009 = vrot.lane.b32.xlu0 %v945, 38
        %v2010 = vpop.permute.xlu0 %2009
        %2011 = vrot.lane.b32.xlu0 %v946, 38
        %v2012 = vpop.permute.xlu0 %2011
        %2013 = vrot.lane.b32.xlu0 %v947, 38
        %v2014 = vpop.permute.xlu0 %2013
        %2015 = vrot.lane.b32.xlu0 %v948, 38
        %v2016 = vpop.permute.xlu0 %2015
        %2017 = vrot.lane.b32.xlu0 %v949, 38
        %v2018 = vpop.permute.xlu0 %2017
        %2019 = vrot.lane.b32.xlu0 %v950, 38
        %v2020 = vpop.permute.xlu0 %2019
        %vm2021 = vcmask 310272
        %v2022 = vsel %vm2021, %v1998, %v2000
        %v2023 = vsel %vm2021, %v2002, %v2004
        %v2024 = vsel %vm2021, %v2006, %v2008
        %v2025 = vsel %vm2021, %v2010, %v2012
        %v2026 = vsel %vm2021, %v2014, %v2016
        %v2027 = vsel %vm2021, %v2018, %v2020
        %v2034 = vsel %vm1248, %v1882, %v1938
        %v2035 = vsel %vm1248, %v1883, %v1939
        %v2036 = vsel %vm1248, %v1884, %v1940
        %v2037 = vsel %vm1248, %v1885, %v1941
        %v2038 = vsel %vm1248, %v1886, %v1942
        %v2039 = vsel %vm1248, %v1887, %v1943
        %v2040 = vsel %vm1254, %v2034, %v1985
        %v2041 = vsel %vm1254, %v2035, %v1986
        %v2042 = vsel %vm1254, %v2036, %v1987
        %v2043 = vsel %vm1254, %v2037, %v1988
        %v2044 = vsel %vm1254, %v2038, %v1989
        %v2045 = vsel %vm1254, %v2039, %v1990
        %v2046 = vsel %vm1260, %v2040, %v2022
        %v2047 = vsel %vm1260, %v2041, %v2023
        %v2048 = vsel %vm1260, %v2042, %v2024
        %v2049 = vsel %vm1260, %v2043, %v2025
        %v2050 = vsel %vm1260, %v2044, %v2026
        %v2051 = vsel %vm1260, %v2045, %v2027
        %v2064 = vrot.slane %v1833, 1
        %v2065 = vrot.slane %v1834, 1
        %v2066 = vsel %vm349, %v2064, %v2065
        %v2067 = vrot.slane %v1851, 1
        %v2068 = vrot.slane %v1852, 1
        %v2069 = vsel %vm349, %v2067, %v2068
        %v2070 = vrot.slane %v1835, 1
        %v2071 = vsel %vm349, %v2065, %v2070
        %v2072 = vrot.slane %v1853, 1
        %v2073 = vsel %vm349, %v2068, %v2072
        %v2074 = vrot.slane %v1836, 1
        %v2075 = vsel %vm349, %v2070, %v2074
        %v2076 = vrot.slane %v1854, 1
        %v2077 = vsel %vm349, %v2072, %v2076
        %v2078 = vrot.slane %v1837, 1
        %v2079 = vsel %vm349, %v2074, %v2078
        %v2080 = vrot.slane %v1855, 1
        %v2081 = vsel %vm349, %v2076, %v2080
        %v2082 = vrot.slane %v1838, 1
        %v2083 = vsel %vm349, %v2078, %v2082
        %v2084 = vrot.slane %v1856, 1
        %v2085 = vsel %vm349, %v2080, %v2084
        %2086 = vrot.lane.b32.xlu0 %v2066, 32
        %v2087 = vpop.permute.xlu0 %2086
        %2088 = vrot.lane.b32.xlu0 %v2069, 32
        %v2089 = vpop.permute.xlu0 %2088
        %2090 = vrot.lane.b32.xlu0 %v2071, 32
        %v2091 = vpop.permute.xlu0 %2090
        %2092 = vrot.lane.b32.xlu0 %v2073, 32
        %v2093 = vpop.permute.xlu0 %2092
        %2094 = vrot.lane.b32.xlu0 %v2075, 32
        %v2095 = vpop.permute.xlu0 %2094
        %2096 = vrot.lane.b32.xlu0 %v2077, 32
        %v2097 = vpop.permute.xlu0 %2096
        %2098 = vrot.lane.b32.xlu0 %v2079, 32
        %v2099 = vpop.permute.xlu0 %2098
        %2100 = vrot.lane.b32.xlu0 %v2081, 32
        %v2101 = vpop.permute.xlu0 %2100
        %2102 = vrot.lane.b32.xlu0 %v2083, 32
        %v2103 = vpop.permute.xlu0 %2102
        %2104 = vrot.lane.b32.xlu0 %v2085, 32
        %v2105 = vpop.permute.xlu0 %2104
        %v2106 = vsel %vm451, %v2087, %v2089
        %v2107 = vsel %vm451, %v2091, %v2093
        %v2108 = vsel %vm451, %v2095, %v2097
        %v2109 = vsel %vm451, %v2099, %v2101
        %v2110 = vsel %vm451, %v2103, %v2105
        %v2127 = vrot.slane %v2046, 2
        %v2128 = vrot.slane %v2047, 2
        %v2129 = vsel %vm983, %v2127, %v2128
        %v2130 = vrot.slane %v2048, 2
        %v2131 = vsel %vm983, %v2128, %v2130
        %v2132 = vrot.slane %v2049, 2
        %v2133 = vsel %vm983, %v2130, %v2132
        %v2134 = vrot.slane %v2050, 2
        %v2135 = vsel %vm983, %v2132, %v2134
        %v2136 = vrot.slane %v2051, 2
        %v2137 = vsel %vm983, %v2134, %v2136
        %2138 = vrot.lane.b32.xlu0 %v2129, 64
        %v2139 = vpop.permute.xlu0 %2138
        %2140 = vrot.lane.b32.xlu0 %v2131, 64
        %v2141 = vpop.permute.xlu0 %2140
        %2142 = vrot.lane.b32.xlu0 %v2133, 64
        %v2143 = vpop.permute.xlu0 %2142
        %2144 = vrot.lane.b32.xlu0 %v2135, 64
        %v2145 = vpop.permute.xlu0 %2144
        %2146 = vrot.lane.b32.xlu0 %v2137, 64
        %v2147 = vpop.permute.xlu0 %2146
        %v2153 = vsel %vm451, %v1333, %v2087
        %v2154 = vsel %vm451, %v1334, %v2091
        %v2155 = vsel %vm451, %v1335, %v2095
        %v2156 = vsel %vm451, %v1336, %v2099
        %v2157 = vsel %vm451, %v1337, %v2103
        %v2158 = vsel %vm485, %v2106, %v2139
        %v2159 = vsel %vm485, %v2107, %v2141
        %v2160 = vsel %vm485, %v2108, %v2143
        %v2161 = vsel %vm485, %v2109, %v2145
        %v2162 = vsel %vm485, %v2110, %v2147
        %v2163 = vld [vmem:[%s3] sm:$0xff]
        %v2164 = vld [vmem:[%s3 + $0x8] sm:$0xff]
        %v2165 = vld [vmem:[%s3 + $0x10] sm:$0xff]
        %v2166 = vld [vmem:[%s3 + $0x18] sm:$0xff]
        %v2167 = vld [vmem:[%s3 + $0x20] sm:$0xff]
        %v2168 = vld [vmem:[%s3 + $0x28] sm:$0xff]
        %v2169 = vld [vmem:[%s3 + $0x30] sm:$0xff]
        %v2170 = vld [vmem:[%s3 + $0x38] sm:$0xff]
        %v2171 = vld [vmem:[%s3 + $0x40] sm:$0xff]
        %v2172 = vld [vmem:[%s3 + $0x48] sm:$0xff]
        %v2173 = vld [vmem:[%s3 + $0x50] sm:$0xff]
        %v2174 = vld [vmem:[%s3 + $0x58] sm:$0xff]
        %v2175 = vld [vmem:[%s3 + $0x60] sm:$0xff]
        %v2176 = vld [vmem:[%s3 + $0x68] sm:$0xff]
        %v2177 = vld [vmem:[%s3 + $0x70] sm:$0xff]
        %v2178 = vld [vmem:[%s3 + $0x78] sm:$0xff]
        %v2179 = vld [vmem:[%s3 + $0x80] sm:$0xff]
        %v2180 = vld [vmem:[%s3 + $0x88] sm:$0xff]
        %v2181 = vld [vmem:[%s3 + $0x90] sm:$0xff]
        %v2182 = vld [vmem:[%s3 + $0x98] sm:$0xff]
        %v2183 = vld [vmem:[%s3 + $0xa0] sm:$0xff]
        %v2184 = vld [vmem:[%s3 + $0xa8] sm:$0xff]
        %v2185 = vld [vmem:[%s3 + $0xb0] sm:$0xff]
        %v2186 = vld [vmem:[%s3 + $0xb8] sm:$0xff]
        %v2187 = vld [vmem:[%s3 + $0xc0] sm:$0xff]
        %v2188 = vld [vmem:[%s3 + $0xc8] sm:$0xff]
        %v2189 = vld [vmem:[%s3 + $0xd0] sm:$0xff]
        %v2190 = vld [vmem:[%s3 + $0xd8] sm:$0xff]
        %v2191 = vld [vmem:[%s3 + $0xe0] sm:$0xff]
        %v2192 = vld [vmem:[%s3 + $0xe8] sm:$0xff]
        %v2193 = vld [vmem:[%s3 + $0xf0] sm:$0xff]
        %v2194 = vld [vmem:[%s3 + $0xf8] sm:$0xff]
        %v2195 = vld [vmem:[%s3 + $0x100] sm:$0xff]
        %v2196 = vld [vmem:[%s3 + $0x108] sm:$0xff]
        %v2197 = vld [vmem:[%s3 + $0x110] sm:$0xff]
        %v2198 = vld [vmem:[%s3 + $0x118] sm:$0xff]
        %v2199 = vld [vmem:[%s3 + $0x120] sm:$0xff]
        %v2200 = vld [vmem:[%s3 + $0x128] sm:$0xff]
        %v2201 = vld [vmem:[%s3 + $0x130] sm:$0xff]
        %v2202 = vld [vmem:[%s3 + $0x138] sm:$0xff]
        %v2203 = vld [vmem:[%s3 + $0x140] sm:$0xff]
        %v2204 = vld [vmem:[%s3 + $0x148] sm:$0xff]
        %v2205 = vld [vmem:[%s3 + $0x150] sm:$0xff]
        %v2206 = vld [vmem:[%s3 + $0x158] sm:$0xff]
        %v2207 = vld [vmem:[%s3 + $0x160] sm:$0xff]
        %vm2208 = vcmask 850944
        %v2210 = vsel %vm2208, %v2158, 0
        %v2213 = vsel %vm2208, %v2159, 0
        %v2216 = vsel %vm2208, %v2160, 0
        %v2219 = vsel %vm2208, %v2161, 0
        %v2222 = vsel %vm2208, %v2162, 0
        %2224 = vmatprep.subr.mxu0 0.0
        %2225 = vmatpush1.msra.mxu0 %v2163
        %2226 = vmatprep.subr.mxu0 0.0
        %2227 = vmatpush1.msra.mxu0 %v2164
        %2228 = vmatprep.subr.mxu0 0.0
        %2229 = vmatpush1.msra.mxu0 %v2165
        %2230 = vmatprep.subr.mxu0 0.0
        %2231 = vmatpush1.msra.mxu0 %v2166
        %2232 = vmatprep.subr.mxu0 0.0
        %2233 = vmatpush1.msra.mxu0 %v2167
        %2234 = vmatprep.subr.mxu0 0.0
        %2235 = vmatpush1.msra.mxu0 %v2168
        %2236 = vmatprep.subr.mxu0 0.0
        %2237 = vmatpush1.msra.mxu0 %v2169
        %2238 = vmatprep.subr.mxu0 0.0
        %2239 = vmatpush1.msra.mxu0 %v2170
        %2240 = vmatprep.subr.mxu0 0.0
        %2241 = vmatpush1.msra.mxu0 %v2171
        %2242 = vmatprep.subr.mxu0 0.0
        %2243 = vmatpush1.msra.mxu0 %v2172
        %2244 = vmatprep.subr.mxu0 0.0
        %2245 = vmatpush1.msra.mxu0 %v2173
        %2246 = vmatprep.subr.mxu0 0.0
        %2247 = vmatpush1.msra.mxu0 %v2174
        %2248 = vmatprep.subr.mxu0 0.0
        %2249 = vmatpush1.msra.mxu0 %v2175
        %2250 = vmatprep.subr.mxu0 0.0
        %2251 = vmatpush1.msra.mxu0 %v2176
        %2252 = vmatprep.subr.mxu0 0.0
        %2253 = vmatpush1.msra.mxu0 %v2177
        %2254 = vmatprep.subr.mxu0 0.0
        %2255 = vmatpush1.msra.mxu0 %v2178
        %2256 = vmatprep.subr.mxu0 0.0
        %2257 = vmatpush1.msra.mxu0 %v2179
        %2258 = vmatprep.subr.mxu0 0.0
        %2259 = vmatpush1.msra.mxu0 %v2180
        %2260 = vmatprep.subr.mxu0 0.0
        %2261 = vmatpush1.msra.mxu0 %v2181
        %2262 = vmatprep.subr.mxu0 0.0
        %2263 = vmatpush1.msra.mxu0 %v2182
        %2264 = vmatprep.subr.mxu0 0.0
        %2265 = vmatpush1.msra.mxu0 %v2183
        %2266 = vmatprep.subr.mxu0 0.0
        %2267 = vmatpush1.msra.mxu0 %v2184
        %2268 = vmatprep.subr.mxu0 0.0
        %2269 = vmatpush1.msra.mxu0 %v2185
        %2270 = vmatprep.subr.mxu0 0.0
        %2271 = vmatpush1.msra.mxu0 %v2186
        %2272 = vmatprep.subr.mxu0 0.0
        %2273 = vmatpush1.msra.mxu0 %v2187
        %2274 = vmatprep.subr.mxu0 0.0
        %2275 = vmatpush1.msra.mxu0 %v2188
        %2276 = vmatprep.subr.mxu0 0.0
        %2277 = vmatpush1.msra.mxu0 %v2189
        %2278 = vmatprep.subr.mxu0 0.0
        %2279 = vmatpush1.msra.mxu0 %v2190
        %2280 = vmatprep.subr.mxu0 0.0
        %2281 = vmatpush1.msra.mxu0 %v2191
        %2282 = vmatprep.subr.mxu0 0.0
        %2283 = vmatpush1.msra.mxu0 %v2192
        %2284 = vmatprep.subr.mxu0 0.0
        %2285 = vmatpush1.msra.mxu0 %v2193
        %2286 = vmatprep.subr.mxu0 0.0
        %2287 = vmatpush1.msra.mxu0 %v2194
        %2288 = vmatprep.mubr.f32.mxu0 %v2153
        %2289 = vmatmul.mubr.f32.gmra.mrb[0].mxu0 %v1315
        %v2290 = vpop.f32.mrb[0].mxu0
        %v2291 = vadd.f32 0.0, %v2290
        %v2292 = vpop.f32.mrb[0].mxu0
        %2293 = vmatprep.mubr.f32.mxu0 %v2154
        %2294 = vmatmul.mubr.f32.gmra.mrb[0].mxu0 %v1316
        %v2295 = vpop.f32.mrb[0].mxu0
        %v2296 = vadd.f32 0.0, %v2295
        %v2297 = vpop.f32.mrb[0].mxu0
        %2298 = vmatprep.mubr.f32.mxu0 %v2155
        %2299 = vmatmul.mubr.f32.gmra.mrb[0].mxu0 %v1317
        %v2300 = vpop.f32.mrb[0].mxu0
        %v2301 = vadd.f32 0.0, %v2300
        %v2302 = vpop.f32.mrb[0].mxu0
        %2303 = vmatprep.mubr.f32.mxu0 %v2156
        %2304 = vmatmul.mubr.f32.gmra.mrb[0].mxu0 %v1318
        %v2305 = vpop.f32.mrb[0].mxu0
        %v2306 = vadd.f32 0.0, %v2305
        %v2307 = vpop.f32.mrb[0].mxu0
        %2308 = vmatprep.mubr.f32.mxu0 %v2157
        %2309 = vmatmul.mubr.f32.gmra.mrb[0].mxu0 %v1319
        %v2310 = vpop.f32.mrb[0].mxu0
        %v2311 = vadd.f32 0.0, %v2310
        %v2312 = vpop.f32.mrb[0].mxu0
        %2313 = vdwg.mxu0
        %2314 = vmatprep.subr.mxu0 0.0
        %2315 = vmatpush1.msra.mxu0 %v2195
        %2316 = vmatprep.subr.mxu0 0.0
        %2317 = vmatpush1.msra.mxu0 %v2196
        %2318 = vmatprep.subr.mxu0 0.0
        %2319 = vmatpush1.msra.mxu0 %v2197
        %2320 = vmatprep.subr.mxu0 0.0
        %2321 = vmatpush1.msra.mxu0 %v2198
        %2322 = vmatprep.subr.mxu0 0.0
        %2323 = vmatpush1.msra.mxu0 %v2199
        %2324 = vmatprep.subr.mxu0 0.0
        %2325 = vmatpush1.msra.mxu0 %v2200
        %2326 = vmatprep.subr.mxu0 0.0
        %2327 = vmatpush1.msra.mxu0 %v2201
        %2328 = vmatprep.subr.mxu0 0.0
        %2329 = vmatpush1.msra.mxu0 %v2202
        %2330 = vmatprep.subr.mxu0 0.0
        %2331 = vmatpush1.msra.mxu0 %v2203
        %2332 = vmatprep.subr.mxu0 0.0
        %2333 = vmatpush1.msra.mxu0 %v2204
        %2334 = vmatprep.subr.mxu0 0.0
        %2335 = vmatpush1.msra.mxu0 %v2205
        %2336 = vmatprep.subr.mxu0 0.0
        %2337 = vmatpush1.msra.mxu0 %v2206
        %2338 = vmatprep.subr.mxu0 0.0
        %2339 = vmatpush1.msra.mxu0 %v2207
        %2340 = vmatprep.subr.mxu0 0.0
        %2341 = vmatpush1.msra.mxu0 0.0
        %2342 = vmatprep.subr.mxu0 0.0
        %2343 = vmatpush1.msra.mxu0 0.0
        %2344 = vmatprep.subr.mxu0 0.0
        %2345 = vmatpush1.msra.mxu0 0.0
        %2346 = vmatprep.subr.mxu0 0.0
        %2347 = vmatpush1.msra.mxu0 0.0
        %2348 = vmatprep.subr.mxu0 0.0
        %2349 = vmatpush1.msra.mxu0 0.0
        %2350 = vmatprep.subr.mxu0 0.0
        %2351 = vmatpush1.msra.mxu0 0.0
        %2352 = vmatprep.subr.mxu0 0.0
        %2353 = vmatpush1.msra.mxu0 0.0
        %2354 = vmatprep.subr.mxu0 0.0
        %2355 = vmatpush1.msra.mxu0 0.0
        %2356 = vmatprep.subr.mxu0 0.0
        %2357 = vmatpush1.msra.mxu0 0.0
        %2358 = vmatprep.subr.mxu0 0.0
        %2359 = vmatpush1.msra.mxu0 0.0
        %2360 = vmatprep.subr.mxu0 0.0
        %2361 = vmatpush1.msra.mxu0 0.0
        %2362 = vmatprep.subr.mxu0 0.0
        %2363 = vmatpush1.msra.mxu0 0.0
        %2364 = vmatprep.subr.mxu0 0.0
        %2365 = vmatpush1.msra.mxu0 0.0
        %2366 = vmatprep.subr.mxu0 0.0
        %2367 = vmatpush1.msra.mxu0 0.0
        %2368 = vmatprep.subr.mxu0 0.0
        %2369 = vmatpush1.msra.mxu0 0.0
        %2370 = vmatprep.subr.mxu0 0.0
        %2371 = vmatpush1.msra.mxu0 0.0
        %2372 = vmatprep.subr.mxu0 0.0
        %2373 = vmatpush1.msra.mxu0 0.0
        %2374 = vmatprep.subr.mxu0 0.0
        %2375 = vmatpush1.msra.mxu0 0.0
        %2376 = vmatprep.subr.mxu0 0.0
        %2377 = vmatpush1.msra.mxu0 0.0
        %2378 = vmatprep.mubr.f32.mxu0 0.0
        %2379 = vmatmul.mubr.f32.gmra.mrb[0].mxu0 %v2210
        %v2380 = vpop.f32.mrb[0].mxu0
        %v2381 = vadd.f32 %v2291, %v2380
        %v2382 = vpop.f32.mrb[0].mxu0
        %2383 = vmatprep.mubr.f32.mxu0 0.0
        %2384 = vmatmul.mubr.f32.gmra.mrb[0].mxu0 %v2213
        %v2385 = vpop.f32.mrb[0].mxu0
        %v2386 = vadd.f32 %v2296, %v2385
        %v2387 = vpop.f32.mrb[0].mxu0
        %2388 = vmatprep.mubr.f32.mxu0 0.0
        %2389 = vmatmul.mubr.f32.gmra.mrb[0].mxu0 %v2216
        %v2390 = vpop.f32.mrb[0].mxu0
        %v2391 = vadd.f32 %v2301, %v2390
        %v2392 = vpop.f32.mrb[0].mxu0
        %2393 = vmatprep.mubr.f32.mxu0 0.0
        %2394 = vmatmul.mubr.f32.gmra.mrb[0].mxu0 %v2219
        %v2395 = vpop.f32.mrb[0].mxu0
        %v2396 = vadd.f32 %v2306, %v2395
        %v2397 = vpop.f32.mrb[0].mxu0
        %2398 = vmatprep.mubr.f32.mxu0 0.0
        %2399 = vmatmul.mubr.f32.gmra.mrb[0].mxu0 %v2222
        %v2400 = vpop.f32.mrb[0].mxu0
        %v2401 = vadd.f32 %v2311, %v2400
        %v2402 = vpop.f32.mrb[0].mxu0
        %2403 = vdwg.mxu0
        %2409 = vrot.lane.b32.xlu0 %v2381, 108
        %v2410 = vpop.permute.xlu0 %2409
        %2411 = vrot.lane.b32.xlu0 %v2386, 108
        %v2412 = vpop.permute.xlu0 %2411
        %2413 = vrot.lane.b32.xlu0 %v2391, 108
        %v2414 = vpop.permute.xlu0 %2413
        %2415 = vrot.lane.b32.xlu0 %v2396, 108
        %v2416 = vpop.permute.xlu0 %2415
        %2417 = vrot.lane.b32.xlu0 %v2401, 108
        %v2418 = vpop.permute.xlu0 %2417
        %v2424 = vmax.f32 %v2381, %v2410
        %v2425 = vmax.f32 %v2386, %v2412
        %v2426 = vmax.f32 %v2391, %v2414
        %v2427 = vmax.f32 %v2396, %v2416
        %v2428 = vmax.f32 %v2401, %v2418
        %2429 = vrot.lane.b32.xlu0 %v2381, 88
        %v2430 = vpop.permute.xlu0 %2429
        %2431 = vrot.lane.b32.xlu0 %v2386, 88
        %v2432 = vpop.permute.xlu0 %2431
        %2433 = vrot.lane.b32.xlu0 %v2391, 88
        %v2434 = vpop.permute.xlu0 %2433
        %2435 = vrot.lane.b32.xlu0 %v2396, 88
        %v2436 = vpop.permute.xlu0 %2435
        %2437 = vrot.lane.b32.xlu0 %v2401, 88
        %v2438 = vpop.permute.xlu0 %2437
        %v2444 = vmax.f32 %v2424, %v2430
        %v2445 = vmax.f32 %v2425, %v2432
        %v2446 = vmax.f32 %v2426, %v2434
        %v2447 = vmax.f32 %v2427, %v2436
        %v2448 = vmax.f32 %v2428, %v2438
        %2449 = vrot.lane.b32.xlu0 %v2381, 68
        %v2450 = vpop.permute.xlu0 %2449
        %2451 = vrot.lane.b32.xlu0 %v2386, 68
        %v2452 = vpop.permute.xlu0 %2451
        %2453 = vrot.lane.b32.xlu0 %v2391, 68
        %v2454 = vpop.permute.xlu0 %2453
        %2455 = vrot.lane.b32.xlu0 %v2396, 68
        %v2456 = vpop.permute.xlu0 %2455
        %2457 = vrot.lane.b32.xlu0 %v2401, 68
        %v2458 = vpop.permute.xlu0 %2457
        %v2464 = vmax.f32 %v2444, %v2450
        %v2465 = vmax.f32 %v2445, %v2452
        %v2466 = vmax.f32 %v2446, %v2454
        %v2467 = vmax.f32 %v2447, %v2456
        %v2468 = vmax.f32 %v2448, %v2458
        %v2469 = vld [vmem:[%s4] sm:$0x1]
        %v2471 = vlaneseq
        %v2472 = vshrl.u32 %v2471, 7
        %v2473 = vsub.s32 0, %v2472
        %v2474 = vrot.slane %v2469, %v2473
        %v2476 = vadd.f32 %v2464, %v2474
        %v2477 = vadd.f32 %v2465, %v2474
        %v2478 = vadd.f32 %v2466, %v2474
        %v2479 = vadd.f32 %v2467, %v2474
        %v2480 = vadd.f32 %v2468, %v2474
        %v2481 = vmax.f32 %v2476, 0.0
        %v2482 = vmax.f32 %v2477, 0.0
        %v2483 = vmax.f32 %v2478, 0.0
        %v2484 = vmax.f32 %v2479, 0.0
        %v2485 = vmax.f32 %v2480, 0.0
        %v2487 = vrot.slane %v2481, 1
        %2488 = vrot.lane.b32.xlu0 %v2487, 20
        %v2489 = vpop.permute.xlu0 %2488
        %v2491 = vrot.slane %v2481, 2
        %2492 = vrot.lane.b32.xlu0 %v2491, 40
        %v2493 = vpop.permute.xlu0 %2492
        %v2495 = vrot.slane %v2481, 3
        %2496 = vrot.lane.b32.xlu0 %v2495, 60
        %v2497 = vpop.permute.xlu0 %2496
        %v2499 = vrot.slane %v2481, 4
        %2500 = vrot.lane.b32.xlu0 %v2499, 80
        %v2501 = vpop.permute.xlu0 %2500
        %2504 = vrot.lane.b32.xlu0 %v2482, 100
        %v2505 = vpop.permute.xlu0 %2504
        %v2507 = vrot.slane %v2482, 1
        %2508 = vrot.lane.b32.xlu0 %v2507, 120
        %v2509 = vpop.permute.xlu0 %2508
        %v2511 = vrot.slane %v2482, 2
        %2512 = vrot.lane.b32.xlu0 %v2511, 12
        %v2513 = vpop.permute.xlu0 %2512
        %v2515 = vrot.slane %v2482, 3
        %2516 = vrot.lane.b32.xlu0 %v2515, 32
        %v2517 = vpop.permute.xlu0 %2516
        %v2519 = vrot.slane %v2482, 4
        %2520 = vrot.lane.b32.xlu0 %v2519, 52
        %v2521 = vpop.permute.xlu0 %2520
        %2524 = vrot.lane.b32.xlu0 %v2483, 72
        %v2525 = vpop.permute.xlu0 %2524
        %v2527 = vrot.slane %v2483, 1
        %2528 = vrot.lane.b32.xlu0 %v2527, 92
        %v2529 = vpop.permute.xlu0 %2528
        %v2531 = vrot.slane %v2483, 2
        %2532 = vrot.lane.b32.xlu0 %v2531, 112
        %v2533 = vpop.permute.xlu0 %2532
        %v2535 = vrot.slane %v2483, 3
        %2536 = vrot.lane.b32.xlu0 %v2535, 4
        %v2537 = vpop.permute.xlu0 %2536
        %v2539 = vrot.slane %v2483, 4
        %2540 = vrot.lane.b32.xlu0 %v2539, 24
        %v2541 = vpop.permute.xlu0 %2540
        %2544 = vrot.lane.b32.xlu0 %v2484, 44
        %v2545 = vpop.permute.xlu0 %2544
        %v2547 = vsel %vm1254, %v2481, %v2489
        %v2548 = vsel %vm1266, %v2547, %v2493
        %v2549 = vsel %vm1278, %v2548, %v2497
        %v2550 = vsel %vm1290, %v2549, %v2501
        %v2551 = vsel %vm1302, %v2550, %v2505
        %v2552 = vsel %vm1314, %v2551, %v2509
        %v2553 = vsel %vm1326, %v2509, %v2513
        %v2554 = vsel %vm451, %v2553, %v2517
        %vm2555 = vcmask 424960
        %v2556 = vsel %vm2555, %v2554, %v2521
        %vm2557 = vcmask 588800
        %v2558 = vsel %vm2557, %v2556, %v2525
        %vm2559 = vcmask 752640
        %v2560 = vsel %vm2559, %v2558, %v2529
        %vm2561 = vcmask 916480
        %v2562 = vsel %vm2561, %v2560, %v2533
        %vm2563 = vcmask 31744
        %v2564 = vsel %vm2563, %v2533, %v2537
        %vm2565 = vcmask 195584
        %v2566 = vsel %vm2565, %v2564, %v2541
        %vm2567 = vcmask 359424
        %v2568 = vsel %vm2567, %v2566, %v2545
        %v2569 = vrot.slane %v2484, 1
        %2570 = vrot.lane.b32.xlu0 %v2569, 20
        %v2571 = vpop.permute.xlu0 %2570
        %v2573 = vrot.slane %v2484, 2
        %2574 = vrot.lane.b32.xlu0 %v2573, 40
        %v2575 = vpop.permute.xlu0 %2574
        %v2577 = vrot.slane %v2484, 3
        %2578 = vrot.lane.b32.xlu0 %v2577, 60
        %v2579 = vpop.permute.xlu0 %2578
        %v2582 = vrot.slane %v2485, 7
        %2583 = vrot.lane.b32.xlu0 %v2582, 80
        %v2584 = vpop.permute.xlu0 %2583
        %2586 = vrot.lane.b32.xlu0 %v2485, 100
        %v2587 = vpop.permute.xlu0 %2586
        %v2589 = vrot.slane %v2485, 1
        %2590 = vrot.lane.b32.xlu0 %v2589, 120
        %v2591 = vpop.permute.xlu0 %2590
        %v2593 = vrot.slane %v2485, 2
        %2594 = vrot.lane.b32.xlu0 %v2593, 12
        %v2595 = vpop.permute.xlu0 %2594
        %v2597 = vrot.slane %v2485, 3
        %2598 = vrot.lane.b32.xlu0 %v2597, 32
        %v2599 = vpop.permute.xlu0 %2598
        %v2601 = vsel %vm1254, %v2484, %v2571
        %v2602 = vsel %vm1266, %v2601, %v2575
        %v2603 = vsel %vm1278, %v2602, %v2579
        %v2604 = vsel %vm1290, %v2603, %v2584
        %v2605 = vsel %vm1302, %v2604, %v2587
        %v2606 = vsel %vm1314, %v2605, %v2591
        %v2607 = vsel %vm1326, %v2591, %v2595
        %v2608 = vsel %vm451, %v2607, %v2599
        %v2611 = vrot.slane %v2606, 1
        %v2612 = vrot.slane %v2608, 1
        %2613 = vrot.lane.b32.xlu0 %v2611, 64
        %v2614 = vpop.permute.xlu0 %2613
        %2615 = vrot.lane.b32.xlu0 %v2612, 64
        %v2616 = vpop.permute.xlu0 %2615
        %v2617 = vsel %vm485, %v2614, %v2616
        %v2619 = vsel %vm485, %v2568, %v2614
        %v2620 = vld [vmem:[%s5] sm:$0xff]
        %v2621 = vld [vmem:[%s5 + $0x8] sm:$0xff]
        %v2622 = vld [vmem:[%s5 + $0x10] sm:$0xff]
        %v2623 = vld [vmem:[%s5 + $0x18] sm:$0xff]
        %v2624 = vld [vmem:[%s5 + $0x20] sm:$0xff]
        %v2625 = vld [vmem:[%s5 + $0x28] sm:$0xff]
        %v2626 = vld [vmem:[%s5 + $0x30] sm:$0xff]
        %v2627 = vld [vmem:[%s5 + $0x38] sm:$0xff]
        %v2628 = vld [vmem:[%s5 + $0x40] sm:$0xff]
        %v2629 = vld [vmem:[%s5 + $0x48] sm:$0xff]
        %v2630 = vld [vmem:[%s5 + $0x50] sm:$0xff]
        %v2631 = vld [vmem:[%s5 + $0x58] sm:$0xff]
        %v2632 = vld [vmem:[%s5 + $0x60] sm:$0xff]
        %v2633 = vld [vmem:[%s5 + $0x68] sm:$0xff]
        %v2634 = vld [vmem:[%s5 + $0x70] sm:$0xff]
        %v2635 = vld [vmem:[%s5 + $0x78] sm:$0xff]
        %v2636 = vld [vmem:[%s5 + $0x80] sm:$0xff]
        %v2637 = vld [vmem:[%s5 + $0x88] sm:$0xff]
        %v2638 = vld [vmem:[%s5 + $0x90] sm:$0xff]
        %v2639 = vld [vmem:[%s5 + $0x98] sm:$0xff]
        %v2640 = vld [vmem:[%s5 + $0xa0] sm:$0xff]
        %v2641 = vld [vmem:[%s5 + $0xa8] sm:$0xff]
        %v2642 = vld [vmem:[%s5 + $0xb0] sm:$0xff]
        %v2643 = vld [vmem:[%s5 + $0xb8] sm:$0xff]
        %v2644 = vld [vmem:[%s5 + $0xc0] sm:$0xff]
        %v2645 = vld [vmem:[%s5 + $0xc8] sm:$0xff]
        %v2646 = vld [vmem:[%s5 + $0xd0] sm:$0xff]
        %v2647 = vld [vmem:[%s5 + $0xd8] sm:$0xff]
        %v2648 = vld [vmem:[%s5 + $0xe0] sm:$0xff]
        %v2649 = vld [vmem:[%s5 + $0xe8] sm:$0xff]
        %v2650 = vld [vmem:[%s5 + $0xf0] sm:$0xff]
        %v2651 = vld [vmem:[%s5 + $0xf8] sm:$0xff]
        %v2652 = vld [vmem:[%s5 + $0x100] sm:$0xff]
        %v2653 = vld [vmem:[%s5 + $0x108] sm:$0xff]
        %v2654 = vld [vmem:[%s5 + $0x110] sm:$0xff]
        %v2655 = vld [vmem:[%s5 + $0x118] sm:$0xff]
        %v2656 = vld [vmem:[%s5 + $0x120] sm:$0xff]
        %v2657 = vld [vmem:[%s5 + $0x128] sm:$0xff]
        %v2658 = vld [vmem:[%s5 + $0x130] sm:$0xff]
        %v2659 = vld [vmem:[%s5 + $0x138] sm:$0xff]
        %v2660 = vld [vmem:[%s5 + $0x140] sm:$0xff]
        %v2661 = vld [vmem:[%s5 + $0x148] sm:$0xff]
        %v2662 = vld [vmem:[%s5 + $0x150] sm:$0xff]
        %v2663 = vld [vmem:[%s5 + $0x158] sm:$0xff]
        %v2664 = vld [vmem:[%s5 + $0x160] sm:$0xff]
        %v2665 = vld [vmem:[%s5 + $0x168] sm:$0xff]
        %v2666 = vld [vmem:[%s5 + $0x170] sm:$0xff]
        %v2667 = vld [vmem:[%s5 + $0x178] sm:$0xff]
        %v2668 = vld [vmem:[%s5 + $0x180] sm:$0xff]
        %v2669 = vld [vmem:[%s5 + $0x188] sm:$0xff]
        %v2670 = vld [vmem:[%s5 + $0x190] sm:$0xff]
        %v2671 = vld [vmem:[%s5 + $0x198] sm:$0xff]
        %v2672 = vld [vmem:[%s5 + $0x1a0] sm:$0xff]
        %v2673 = vld [vmem:[%s5 + $0x1a8] sm:$0xff]
        %v2674 = vld [vmem:[%s5 + $0x1b0] sm:$0xff]
        %v2675 = vld [vmem:[%s5 + $0x1b8] sm:$0xff]
        %v2676 = vld [vmem:[%s5 + $0x1c0] sm:$0xff]
        %v2677 = vld [vmem:[%s5 + $0x1c8] sm:$0xff]
        %v2678 = vld [vmem:[%s5 + $0x1d0] sm:$0xff]
        %v2679 = vld [vmem:[%s5 + $0x1d8] sm:$0xff]
        %v2680 = vld [vmem:[%s5 + $0x1e0] sm:$0xff]
        %v2681 = vld [vmem:[%s5 + $0x1e8] sm:$0xff]
        %v2682 = vld [vmem:[%s5 + $0x1f0] sm:$0xf]
        %v2683 = vld [vmem:[%s6] sm:$0x1]
        %vm2684 = vcmask 949248
        %v2685 = vsel %vm2684, %v2617, 0
        %vm2687 = vcmask 1043456
        %v2689 = vsel %vm2687, %v2682, 0
        %2691 = vmatprep.subr.mxu0 0.0
        %2692 = vmatpush1.msra.mxu0 %v2620
        %2693 = vmatprep.subr.mxu0 0.0
        %2694 = vmatpush1.msra.mxu0 %v2621
        %2695 = vmatprep.subr.mxu0 0.0
        %2696 = vmatpush1.msra.mxu0 %v2622
        %2697 = vmatprep.subr.mxu0 0.0
        %2698 = vmatpush1.msra.mxu0 %v2623
        %2699 = vmatprep.subr.mxu0 0.0
        %2700 = vmatpush1.msra.mxu0 %v2624
        %2701 = vmatprep.subr.mxu0 0.0
        %2702 = vmatpush1.msra.mxu0 %v2625
        %2703 = vmatprep.subr.mxu0 0.0
        %2704 = vmatpush1.msra.mxu0 %v2626
        %2705 = vmatprep.subr.mxu0 0.0
        %2706 = vmatpush1.msra.mxu0 %v2627
        %2707 = vmatprep.subr.mxu0 0.0
        %2708 = vmatpush1.msra.mxu0 %v2628
        %2709 = vmatprep.subr.mxu0 0.0
        %2710 = vmatpush1.msra.mxu0 %v2629
        %2711 = vmatprep.subr.mxu0 0.0
        %2712 = vmatpush1.msra.mxu0 %v2630
        %2713 = vmatprep.subr.mxu0 0.0
        %2714 = vmatpush1.msra.mxu0 %v2631
        %2715 = vmatprep.subr.mxu0 0.0
        %2716 = vmatpush1.msra.mxu0 %v2632
        %2717 = vmatprep.subr.mxu0 0.0
        %2718 = vmatpush1.msra.mxu0 %v2633
        %2719 = vmatprep.subr.mxu0 0.0
        %2720 = vmatpush1.msra.mxu0 %v2634
        %2721 = vmatprep.subr.mxu0 0.0
        %2722 = vmatpush1.msra.mxu0 %v2635
        %2723 = vmatprep.subr.mxu0 0.0
        %2724 = vmatpush1.msra.mxu0 %v2636
        %2725 = vmatprep.subr.mxu0 0.0
        %2726 = vmatpush1.msra.mxu0 %v2637
        %2727 = vmatprep.subr.mxu0 0.0
        %2728 = vmatpush1.msra.mxu0 %v2638
        %2729 = vmatprep.subr.mxu0 0.0
        %2730 = vmatpush1.msra.mxu0 %v2639
        %2731 = vmatprep.subr.mxu0 0.0
        %2732 = vmatpush1.msra.mxu0 %v2640
        %2733 = vmatprep.subr.mxu0 0.0
        %2734 = vmatpush1.msra.mxu0 %v2641
        %2735 = vmatprep.subr.mxu0 0.0
        %2736 = vmatpush1.msra.mxu0 %v2642
        %2737 = vmatprep.subr.mxu0 0.0
        %2738 = vmatpush1.msra.mxu0 %v2643
        %2739 = vmatprep.subr.mxu0 0.0
        %2740 = vmatpush1.msra.mxu0 %v2644
        %2741 = vmatprep.subr.mxu0 0.0
        %2742 = vmatpush1.msra.mxu0 %v2645
        %2743 = vmatprep.subr.mxu0 0.0
        %2744 = vmatpush1.msra.mxu0 %v2646
        %2745 = vmatprep.subr.mxu0 0.0
        %2746 = vmatpush1.msra.mxu0 %v2647
        %2747 = vmatprep.subr.mxu0 0.0
        %2748 = vmatpush1.msra.mxu0 %v2648
        %2749 = vmatprep.subr.mxu0 0.0
        %2750 = vmatpush1.msra.mxu0 %v2649
        %2751 = vmatprep.subr.mxu0 0.0
        %2752 = vmatpush1.msra.mxu0 %v2650
        %2753 = vmatprep.subr.mxu0 0.0
        %2754 = vmatpush1.msra.mxu0 %v2651
        %2755 = vmatprep.mubr.f32.mxu0 %v2562
        %2756 = vmatmul.mubr.f32.gmra.mrb[0].mxu0 %v2552
        %v2757 = vpop.f32.mrb[0].mxu0
        %v2758 = vadd.f32 %v2683, %v2757
        %v2759 = vpop.f32.mrb[0].mxu0
        %2760 = vdwg.mxu0
        %2761 = vmatprep.subr.mxu0 0.0
        %2762 = vmatpush1.msra.mxu0 %v2652
        %2763 = vmatprep.subr.mxu0 0.0
        %2764 = vmatpush1.msra.mxu0 %v2653
        %2765 = vmatprep.subr.mxu0 0.0
        %2766 = vmatpush1.msra.mxu0 %v2654
        %2767 = vmatprep.subr.mxu0 0.0
        %2768 = vmatpush1.msra.mxu0 %v2655
        %2769 = vmatprep.subr.mxu0 0.0
        %2770 = vmatpush1.msra.mxu0 %v2656
        %2771 = vmatprep.subr.mxu0 0.0
        %2772 = vmatpush1.msra.mxu0 %v2657
        %2773 = vmatprep.subr.mxu0 0.0
        %2774 = vmatpush1.msra.mxu0 %v2658
        %2775 = vmatprep.subr.mxu0 0.0
        %2776 = vmatpush1.msra.mxu0 %v2659
        %2777 = vmatprep.subr.mxu0 0.0
        %2778 = vmatpush1.msra.mxu0 %v2660
        %2779 = vmatprep.subr.mxu0 0.0
        %2780 = vmatpush1.msra.mxu0 %v2661
        %2781 = vmatprep.subr.mxu0 0.0
        %2782 = vmatpush1.msra.mxu0 %v2662
        %2783 = vmatprep.subr.mxu0 0.0
        %2784 = vmatpush1.msra.mxu0 %v2663
        %2785 = vmatprep.subr.mxu0 0.0
        %2786 = vmatpush1.msra.mxu0 %v2664
        %2787 = vmatprep.subr.mxu0 0.0
        %2788 = vmatpush1.msra.mxu0 %v2665
        %2789 = vmatprep.subr.mxu0 0.0
        %2790 = vmatpush1.msra.mxu0 %v2666
        %2791 = vmatprep.subr.mxu0 0.0
        %2792 = vmatpush1.msra.mxu0 %v2667
        %2793 = vmatprep.subr.mxu0 0.0
        %2794 = vmatpush1.msra.mxu0 %v2668
        %2795 = vmatprep.subr.mxu0 0.0
        %2796 = vmatpush1.msra.mxu0 %v2669
        %2797 = vmatprep.subr.mxu0 0.0
        %2798 = vmatpush1.msra.mxu0 %v2670
        %2799 = vmatprep.subr.mxu0 0.0
        %2800 = vmatpush1.msra.mxu0 %v2671
        %2801 = vmatprep.subr.mxu0 0.0
        %2802 = vmatpush1.msra.mxu0 %v2672
        %2803 = vmatprep.subr.mxu0 0.0
        %2804 = vmatpush1.msra.mxu0 %v2673
        %2805 = vmatprep.subr.mxu0 0.0
        %2806 = vmatpush1.msra.mxu0 %v2674
        %2807 = vmatprep.subr.mxu0 0.0
        %2808 = vmatpush1.msra.mxu0 %v2675
        %2809 = vmatprep.subr.mxu0 0.0
        %2810 = vmatpush1.msra.mxu0 %v2676
        %2811 = vmatprep.subr.mxu0 0.0
        %2812 = vmatpush1.msra.mxu0 %v2677
        %2813 = vmatprep.subr.mxu0 0.0
        %2814 = vmatpush1.msra.mxu0 %v2678
        %2815 = vmatprep.subr.mxu0 0.0
        %2816 = vmatpush1.msra.mxu0 %v2679
        %2817 = vmatprep.subr.mxu0 0.0
        %2818 = vmatpush1.msra.mxu0 %v2680
        %2819 = vmatprep.subr.mxu0 0.0
        %2820 = vmatpush1.msra.mxu0 %v2681
        %2821 = vmatprep.subr.mxu0 0.0
        %2822 = vmatpush1.msra.mxu0 %v2689
        %2823 = vmatprep.subr.mxu0 0.0
        %2824 = vmatpush1.msra.mxu0 0.0
        %2825 = vmatprep.mubr.f32.mxu0 %v2685
        %2826 = vmatmul.mubr.f32.gmra.mrb[0].mxu0 %v2619
        %v2827 = vpop.f32.mrb[0].mxu0
        %v2828 = vadd.f32 %v2758, %v2827
        %v2829 = vpop.f32.mrb[0].mxu0
        %2830 = vdwg.mxu0
        %v2831 = vmax.f32 %v2828, 0.0
        %v2832 = vld [vmem:[%s7] sm:$0xff]
        %v2833 = vld [vmem:[%s7 + $0x8] sm:$0xff]
        %v2834 = vld [vmem:[%s7 + $0x10] sm:$0xff]
        %v2835 = vld [vmem:[%s7 + $0x18] sm:$0xff]
        %v2836 = vld [vmem:[%s7 + $0x20] sm:$0xff]
        %v2837 = vld [vmem:[%s7 + $0x28] sm:$0xff]
        %v2838 = vld [vmem:[%s7 + $0x30] sm:$0x3]
        %v2839 = vld [vmem:[%s8] sm:$0x1]
        %v2841 = vsel %vm1272, %v2831, 0
        %v2844 = vsel %vm1894, %v2838, 0
        %2846 = vmatprep.subr.mxu0 0.0
        %2847 = vmatpush1.msra.mxu0 %v2832
        %2848 = vmatprep.subr.mxu0 0.0
        %2849 = vmatpush1.msra.mxu0 %v2833
        %2850 = vmatprep.subr.mxu0 0.0
        %2851 = vmatpush1.msra.mxu0 %v2834
        %2852 = vmatprep.subr.mxu0 0.0
        %2853 = vmatpush1.msra.mxu0 %v2835
        %2854 = vmatprep.subr.mxu0 0.0
        %2855 = vmatpush1.msra.mxu0 %v2836
        %2856 = vmatprep.subr.mxu0 0.0
        %2857 = vmatpush1.msra.mxu0 %v2837
        %2858 = vmatprep.subr.mxu0 0.0
        %2859 = vmatpush1.msra.mxu0 %v2844
        %2860 = vmatprep.subr.mxu0 0.0
        %2861 = vmatpush1.msra.mxu0 0.0
        %2862 = vmatprep.subr.mxu0 0.0
        %2863 = vmatpush1.msra.mxu0 0.0
        %2864 = vmatprep.subr.mxu0 0.0
        %2865 = vmatpush1.msra.mxu0 0.0
        %2866 = vmatprep.subr.mxu0 0.0
        %2867 = vmatpush1.msra.mxu0 0.0
        %2868 = vmatprep.subr.mxu0 0.0
        %2869 = vmatpush1.msra.mxu0 0.0
        %2870 = vmatprep.subr.mxu0 0.0
        %2871 = vmatpush1.msra.mxu0 0.0
        %2872 = vmatprep.subr.mxu0 0.0
        %2873 = vmatpush1.msra.mxu0 0.0
        %2874 = vmatprep.subr.mxu0 0.0
        %2875 = vmatpush1.msra.mxu0 0.0
        %2876 = vmatprep.subr.mxu0 0.0
        %2877 = vmatpush1.msra.mxu0 0.0
        %2878 = vmatprep.subr.mxu0 0.0
        %2879 = vmatpush1.msra.mxu0 0.0
        %2880 = vmatprep.subr.mxu0 0.0
        %2881 = vmatpush1.msra.mxu0 0.0
        %2882 = vmatprep.subr.mxu0 0.0
        %2883 = vmatpush1.msra.mxu0 0.0
        %2884 = vmatprep.subr.mxu0 0.0
        %2885 = vmatpush1.msra.mxu0 0.0
        %2886 = vmatprep.subr.mxu0 0.0
        %2887 = vmatpush1.msra.mxu0 0.0
        %2888 = vmatprep.subr.mxu0 0.0
        %2889 = vmatpush1.msra.mxu0 0.0
        %2890 = vmatprep.subr.mxu0 0.0
        %2891 = vmatpush1.msra.mxu0 0.0
        %2892 = vmatprep.subr.mxu0 0.0
        %2893 = vmatpush1.msra.mxu0 0.0
        %2894 = vmatprep.subr.mxu0 0.0
        %2895 = vmatpush1.msra.mxu0 0.0
        %2896 = vmatprep.subr.mxu0 0.0
        %2897 = vmatpush1.msra.mxu0 0.0
        %2898 = vmatprep.subr.mxu0 0.0
        %2899 = vmatpush1.msra.mxu0 0.0
        %2900 = vmatprep.subr.mxu0 0.0
        %2901 = vmatpush1.msra.mxu0 0.0
        %2902 = vmatprep.subr.mxu0 0.0
        %2903 = vmatpush1.msra.mxu0 0.0
        %2904 = vmatprep.subr.mxu0 0.0
        %2905 = vmatpush1.msra.mxu0 0.0
        %2906 = vmatprep.subr.mxu0 0.0
        %2907 = vmatpush1.msra.mxu0 0.0
        %2908 = vmatprep.subr.mxu0 0.0
        %2909 = vmatpush1.msra.mxu0 0.0
        %2910 = vmatprep.mubr.f32.mxu0 0.0
        %2911 = vmatmul.mubr.f32.gmra.mrb[0].mxu0 %v2841
        %v2912 = vpop.f32.mrb[0].mxu0
        %v2913 = vadd.f32 %v2839, %v2912
        %v2914 = vpop.f32.mrb[0].mxu0
        %2915 = vdwg.mxu0
        %vm2916 = vcmask 73728
        %v2917 = vsel %vm2916, %v2913, -inf
        %2918 = vmax.xlane.f32.xlu0 %v2917
        %v2919 = vpop.xlane.xlu0 %2918
        %v2920 = vsub.f32 %v2913, %v2919
        %v2921 = vmul.f32 %v2920, 1.442695
        %v2922 = vpow.pop %v2921
        %v2923 = vsel %vm2916, %v2922, 0.0
        %2924 = vadd.xlane.f32.xlu0 %v2923
        %v2925 = vpop.xlane.xlu0 %2924
        %v2926 = vlog2.pop %v2925
        %v2927 = vmul.f32 %v2926, 0.6931472
        %v2928 = vsub.f32 %v2920, %v2927
        %2929 = vst.msk [vmem:[%s324] sm:$0x1] %vm2916, %v2928
        %s2930 = sand.u32 %s225, 1
        %s2931 = scalar_lea.sflag [#allocation3], %s2930
        %s2932 = sand.u32 %s225, 1
        %s2933 = scalar_lea.vmem [#allocation2], %s2932
        // Predicated region
        $region57: #{mnist_classifier_forward.1} parent=55 // pred_check
          %p2934 = pneg %p235
        $region58: #{mnist_classifier_forward.1} parent=55 // pred_check_branch
          %2936 = sbr.rel (%p2934) target = $region60
        $region59: #{mnist_classifier_forward.1} parent=55 // pred_region
          %s2938 = ssub.s32 16, 16
          %2939 = vsyncadd %s2931, %s2938
          %s2940 = smul.addr %s23, 16
          %s2941 = scalar_lea.hbm %s9, %s2940
          %s2943 = sshll.u32 %s2933, 4
          %s2944 = int_to_ptr.vmem [resolvable:$true] %s2943
          %2946 = dma.vmem_to_hbm [thread:$0]  %s2944, 16, %s2941, %s2931
        $region60: #{mnist_classifier_forward.1} parent=55 // pred_fallthru
          _
      $region56: #{mnist_classifier_forward.1} parent=5 // pred_fallthru
        _
      %p2947 = scmp.le.s32.totalorder 2, %s18
      // Predicated region
      $region61: #{mnist_classifier_forward.1} parent=5 // pred_check
        %p2948 = pneg %p2947
      $region62: #{mnist_classifier_forward.1} parent=5 // pred_check_branch
        %2950 = sbr.rel (%p2948) target = $region64
      $region63: #{mnist_classifier_forward.1} parent=5 // pred_region
        %s2951 = ssub.s32 %s18, 2
        // Predicated region
        $region65: #{mnist_classifier_forward.1} parent=63 // pred_check
          %p2952 = pneg %p241
        $region66: #{mnist_classifier_forward.1} parent=63 // pred_check_branch
          %2954 = sbr.rel (%p2952) target = $region68
        $region67: #{mnist_classifier_forward.1} parent=63 // pred_region
          %s2955 = sand.u32 %s226, 1
          %s2956 = scalar_lea.sflag [#allocation3], %s2955
          %s2957 = sand.u32 %s226, 1
          %s2958 = scalar_lea.vmem [#allocation2], %s2957
          %2959 = dma.done %s2956, 16
        $region68: #{mnist_classifier_forward.1} parent=63 // pred_fallthru
          _
      $region64: #{mnist_classifier_forward.1} parent=5 // pred_fallthru
        _
    $region6: #{mnist_classifier_forward.1} parent=1 // loop_footer
      %s22 = sadd.s32 1, %s18
    $region7: #{mnist_classifier_forward.1} parent=1 // loop_footer_branch
      %17 = sbr.rel target = $region3
    $region8: #{mnist_classifier_forward.1} parent=1 // loop_exit
      _
    %2960 = vsyncpa [#allocation3], 1
    %s2961 = scalar_lea.sflag [#allocation3], 1
    %2962 = vsyncpa %s2961, 1

</llo_original>
